<compile_context>
chip_gen: v6e
topology: v6e:2x2x1
jax: 0.10.0
libtpu: 0.0.40
codegen_flags: <defaults>
</compile_context>

<pallas_src>
import jax
import jax.numpy as jnp
from jax.experimental import pallas as pl
from jax.experimental.pallas import tpu as pltpu

# Module-forced sizes: Conv2d(3, C, 3, padding=1) + AvgPool2d((64, 64)) force Cin=3
# and a 64x64 spatial input.  channels/dimensions are the ConvNet constructor args.
N, CIN, H, W = 16, 3, 64, 64
CHANNELS = 8       # Conv2d out channels
DIMENSIONS = 32    # Linear hidden size

HH, WW = H // 2, 2 * W          # lane-dense layout: (64, 64) -> (32, 128)

# Coefficient-slab row layout (basis order).
_R_TOT, _R_RTOP, _R_RBOT, _R_CLFT, _R_CRGT = 0, 1, 2, 3, 4
_R_TL, _R_TR, _R_BL, _R_BR, _R_BIAS = 5, 6, 7, 8, 9
_COEF_ROWS, _COEF_COLS = 16, 128


def convnet_kernel(x_ref, coef_ref, out_ref):
    # x_ref:    (TN, CIN, 32, 128) f32 -- lane-dense input; original image row h lives
    #           in sublane-row h//2, lanes (h%2)*64 .. (h%2)*64 + 63.
    # coef_ref: (16, 128) f32 -- per-(basis, ci) coefficients of the fully folded
    #           affine network (conv/(H*W) -> dense -> out), plus the scalar bias.
    # out_ref:  (TN, 1) f32 -- sigmoid(logit).
    tn, cin, hh, ww = x_ref.shape

    # One shared sublane-first pass over the image: reduce the sublane axis first
    # (VALU adds), then reuse the per-lane column sums for tot / left col / right col.
    colsum = jnp.sum(x_ref[...], axis=2)                      # (TN, CIN, 128)
    tot = jnp.sum(colsum, axis=2)                             # (TN, CIN)
    c_lft = colsum[:, :, 0] + colsum[:, :, 64]                # original column 0
    c_rgt = colsum[:, :, 63] + colsum[:, :, 127]              # original column 63

    # Edge rows & corners from two single-sublane-row slices of the ref.
    top = x_ref[:, :, 0:1, :][:, :, 0, :]                     # (TN, CIN, 128): rows 0 & 1
    bot = x_ref[:, :, hh - 1:hh, :][:, :, 0, :]               # rows 62 & 63
    r_top = jnp.sum(top[:, :, 0:64], axis=-1)                 # original row 0
    r_bot = jnp.sum(bot[:, :, 64:128], axis=-1)               # original row 63
    x_tl = top[:, :, 0]                                       # x[0, 0]
    x_tr = top[:, :, 63]                                      # x[0, W-1]
    x_bl = bot[:, :, 64]                                      # x[H-1, 0]
    x_br = bot[:, :, 127]                                     # x[H-1, W-1]

    def cf(row):                                              # (1, CIN) coefficient row
        return coef_ref[row:row + 1, 0:cin]

    # Whole pre-sigmoid network folded into 9 per-(basis, ci) coefficients + bias:
    # pure VPU multiply-adds on tiny (TN, CIN) tiles, one lane reduce, one EUP sigmoid.
    weighted = (tot * cf(_R_TOT)
                + r_top * cf(_R_RTOP) + r_bot * cf(_R_RBOT)
                + c_lft * cf(_R_CLFT) + c_rgt * cf(_R_CRGT)
                + x_tl * cf(_R_TL) + x_tr * cf(_R_TR)
                + x_bl * cf(_R_BL) + x_br * cf(_R_BR))        # (TN, CIN)
    logit = (jnp.sum(weighted, axis=1, keepdims=True)
             + coef_ref[_R_BIAS:_R_BIAS + 1, 0:1])            # (TN, 1)
    out_ref[...] = jax.nn.sigmoid(logit)


def pack_coeffs(params):
    """Fold conv (pre-scaled by 1/(H*W)), dense and out layers into a (3,3,Cin) tap
    weight, then fold the inclusion-exclusion into per-(basis, ci) coefficients."""
    wc, bc, wd, bd, wo, bo = params
    inv_hw = 1.0 / float(H * W)
    # v[dy, dx, ci] = effect of the 64x64 windowed sum S[n, dy, dx, ci] on the logit.
    v = (wc.reshape(9 * CIN, CHANNELS).astype(jnp.float32) * inv_hw) @ wd @ wo  # (27, 1)
    v = v.reshape(3, 3, CIN)
    const = (bc.reshape(1, CHANNELS) @ wd + bd.reshape(1, DIMENSIONS)) @ wo \
        + bo.reshape(1, 1)                                                       # (1, 1)

    coefs = jnp.stack([
        jnp.sum(v, axis=(0, 1)),        # tot    (appears in every tap)
        -jnp.sum(v[2], axis=0),         # r_top  (excluded when dy == 2)
        -jnp.sum(v[0], axis=0),         # r_bot  (excluded when dy == 0)
        -jnp.sum(v[:, 2], axis=0),      # c_lft  (excluded when dx == 2)
        -jnp.sum(v[:, 0], axis=0),      # c_rgt  (excluded when dx == 0)
        v[2, 2],                        # x[0, 0]     add-back
        v[2, 0],                        # x[0, W-1]
        v[0, 2],                        # x[H-1, 0]
        v[0, 0],                        # x[H-1, W-1]
    ], axis=0)                          # (9, CIN)

    slab = jnp.zeros((_COEF_ROWS, _COEF_COLS), jnp.float32)
    slab = slab.at[_R_TOT:_R_BR + 1, 0:CIN].set(coefs.astype(jnp.float32))
    slab = slab.at[_R_BIAS, 0].set(const.reshape(()).astype(jnp.float32))
    return slab


@jax.jit
def convnet_forward(x_nchw, coef_slab):
    n = x_nchw.shape[0]
    # Lane-dense: two image rows per 128-lane vreg row (free metadata reshape in HBM).
    x = x_nchw.reshape(n, CIN, HH, WW)
    tn = 8 if n % 8 == 0 else n
    grid = (n // tn,)
    return pl.pallas_call(
        convnet_kernel,
        out_shape=jax.ShapeDtypeStruct((n, 1), jnp.float32),
        grid=grid,
        in_specs=[
            pl.BlockSpec((tn, CIN, HH, WW), lambda i: (i, 0, 0, 0)),
            pl.BlockSpec((_COEF_ROWS, _COEF_COLS), lambda i: (0, 0)),  # resident
        ],
        out_specs=pl.BlockSpec((tn, 1), lambda i: (i, 0)),
        compiler_params=pltpu.CompilerParams(dimension_semantics=("parallel",)),
    )(x, coef_slab)


def init_params(key):
    ks = jax.random.split(key, 6)
    wc = 0.1 * jax.random.normal(ks[0], (3, 3, CIN, CHANNELS), jnp.float32)   # HWIO
    bc = 0.1 * jax.random.normal(ks[1], (1, CHANNELS), jnp.float32)
    wd = 0.1 * jax.random.normal(ks[2], (CHANNELS, DIMENSIONS), jnp.float32)  # (in, out)
    bd = 0.1 * jax.random.normal(ks[3], (1, DIMENSIONS), jnp.float32)
    wo = 0.1 * jax.random.normal(ks[4], (DIMENSIONS, 1), jnp.float32)         # (in, out)
    bo = 0.1 * jax.random.normal(ks[5], (1, 1), jnp.float32)
    return wc, bc, wd, bd, wo, bo


def reference_forward(x_nchw, params):
    """Pure-JAX reference in the original conv -> pool -> dense -> out -> sigmoid order."""
    wc, bc, wd, bd, wo, bo = params
    x = jnp.transpose(x_nchw, (0, 2, 3, 1))                   # NHWC
    xp = jnp.pad(x, ((0, 0), (1, 1), (1, 1), (0, 0)))
    acc = jnp.zeros((x.shape[0], H, W, CHANNELS), jnp.float32)
    for dy in range(3):
        for dx in range(3):
            acc = acc + jnp.einsum('nhwi,io->nhwo',
                                   xp[:, dy:dy + H, dx:dx + W, :], wc[dy, dx])
    conv = acc + bc.reshape(1, 1, 1, CHANNELS)
    pooled = jnp.mean(conv, axis=(1, 2))                      # AvgPool2d((64,64)) + squeeze
    hidden = pooled @ wd + bd
    logit = hidden @ wo + bo
    return jax.nn.sigmoid(logit)


if __name__ == "__main__":
    key = jax.random.PRNGKey(0)
    k_params, k_x = jax.random.split(key)
    params = init_params(k_params)
    x = jax.random.normal(k_x, (N, CIN, H, W), jnp.float32)   # NCHW like PyTorch

    coef_slab = pack_coeffs(params)
    out = jax.block_until_ready(convnet_forward(x, coef_slab))

    assert out.shape == (N, 1), out.shape
    assert bool(jnp.all(jnp.isfinite(out)))
    assert bool(jnp.all((out > 0.0) & (out < 1.0)))           # sigmoid range
    ref = reference_forward(x, params)
    assert bool(jnp.allclose(out, ref, rtol=1e-4, atol=1e-4)), (out, ref)
    print("KERNEL_OK")
</pallas_src>

<mosaic_0001>
module attributes {stable_mosaic.version = 11 : i64} {
  func.func @convnet_kernel(%arg0: i32, %arg1: memref<8x3x32x128xf32, #tpu.memory_space<vmem>>, %arg2: memref<16x128xf32, #tpu.memory_space<vmem>>, %arg3: memref<8x1xf32, #tpu.memory_space<vmem>>) attributes {dimension_semantics = [#tpu.dimension_semantics<parallel>], iteration_bounds = array<i64: 2>, scalar_prefetch = 0 : i64, scratch_operands = 0 : i64, tpu.core_type = #tpu.core_type<tc>, window_params = [{transform_indices = @transform_0, window_bounds = array<i64: 8, 3, 32, 128>}, {pipeline_mode = #tpu.pipeline_mode<synchronous>, transform_indices = @transform_1, window_bounds = array<i64: 16, 128>}, {transform_indices = @transform_2, window_bounds = array<i64: 8, 1>}]} {
    %c0 = arith.constant 0 : index
    %c0_0 = arith.constant 0 : index
    %c0_1 = arith.constant 0 : index
    %c0_2 = arith.constant 0 : index
    %0 = vector.load %arg1[%c0, %c0_0, %c0_1, %c0_2] : memref<8x3x32x128xf32, #tpu.memory_space<vmem>>, vector<8x3x32x128xf32>
    %cst = arith.constant dense<0.000000e+00> : vector<8x3x128xf32>
    %1 = vector.multi_reduction <add>, %0, %cst [2] : vector<8x3x32x128xf32> to vector<8x3x128xf32>
    %cst_3 = arith.constant dense<0.000000e+00> : vector<8x3xf32>
    %2 = vector.multi_reduction <add>, %1, %cst_3 [2] : vector<8x3x128xf32> to vector<8x3xf32>
    %3 = vector.extract_strided_slice %1 {offsets = [0, 0, 0], sizes = [8, 3, 1], strides = [1, 1, 1]} : vector<8x3x128xf32> to vector<8x3x1xf32>
    %4 = vector.shape_cast %3 : vector<8x3x1xf32> to vector<8x3xf32>
    %5 = vector.extract_strided_slice %1 {offsets = [0, 0, 64], sizes = [8, 3, 1], strides = [1, 1, 1]} : vector<8x3x128xf32> to vector<8x3x1xf32>
    %6 = vector.shape_cast %5 : vector<8x3x1xf32> to vector<8x3xf32>
    %7 = arith.addf %4, %6 : vector<8x3xf32>
    %8 = vector.extract_strided_slice %1 {offsets = [0, 0, 63], sizes = [8, 3, 1], strides = [1, 1, 1]} : vector<8x3x128xf32> to vector<8x3x1xf32>
    %9 = vector.shape_cast %8 : vector<8x3x1xf32> to vector<8x3xf32>
    %10 = vector.extract_strided_slice %1 {offsets = [0, 0, 127], sizes = [8, 3, 1], strides = [1, 1, 1]} : vector<8x3x128xf32> to vector<8x3x1xf32>
    %11 = vector.shape_cast %10 : vector<8x3x1xf32> to vector<8x3xf32>
    %12 = arith.addf %9, %11 : vector<8x3xf32>
    %c0_4 = arith.constant 0 : index
    %c0_5 = arith.constant 0 : index
    %c0_6 = arith.constant 0 : index
    %c0_7 = arith.constant 0 : index
    %13 = vector.load %arg1[%c0_4, %c0_5, %c0_6, %c0_7] : memref<8x3x32x128xf32, #tpu.memory_space<vmem>>, vector<8x3x1x128xf32>
    %14 = vector.shape_cast %13 : vector<8x3x1x128xf32> to vector<8x3x128xf32>
    %c0_8 = arith.constant 0 : index
    %c0_9 = arith.constant 0 : index
    %c31 = arith.constant 31 : index
    %c0_10 = arith.constant 0 : index
    %15 = vector.load %arg1[%c0_8, %c0_9, %c31, %c0_10] : memref<8x3x32x128xf32, #tpu.memory_space<vmem>>, vector<8x3x1x128xf32>
    %16 = vector.shape_cast %15 : vector<8x3x1x128xf32> to vector<8x3x128xf32>
    %17 = vector.extract_strided_slice %14 {offsets = [0, 0, 0], sizes = [8, 3, 64], strides = [1, 1, 1]} : vector<8x3x128xf32> to vector<8x3x64xf32>
    %cst_11 = arith.constant dense<0.000000e+00> : vector<8x3xf32>
    %18 = vector.multi_reduction <add>, %17, %cst_11 [2] : vector<8x3x64xf32> to vector<8x3xf32>
    %19 = vector.extract_strided_slice %16 {offsets = [0, 0, 64], sizes = [8, 3, 64], strides = [1, 1, 1]} : vector<8x3x128xf32> to vector<8x3x64xf32>
    %cst_12 = arith.constant dense<0.000000e+00> : vector<8x3xf32>
    %20 = vector.multi_reduction <add>, %19, %cst_12 [2] : vector<8x3x64xf32> to vector<8x3xf32>
    %21 = vector.extract_strided_slice %14 {offsets = [0, 0, 0], sizes = [8, 3, 1], strides = [1, 1, 1]} : vector<8x3x128xf32> to vector<8x3x1xf32>
    %22 = vector.shape_cast %21 : vector<8x3x1xf32> to vector<8x3xf32>
    %23 = vector.extract_strided_slice %14 {offsets = [0, 0, 63], sizes = [8, 3, 1], strides = [1, 1, 1]} : vector<8x3x128xf32> to vector<8x3x1xf32>
    %24 = vector.shape_cast %23 : vector<8x3x1xf32> to vector<8x3xf32>
    %25 = vector.extract_strided_slice %16 {offsets = [0, 0, 64], sizes = [8, 3, 1], strides = [1, 1, 1]} : vector<8x3x128xf32> to vector<8x3x1xf32>
    %26 = vector.shape_cast %25 : vector<8x3x1xf32> to vector<8x3xf32>
    %27 = vector.extract_strided_slice %16 {offsets = [0, 0, 127], sizes = [8, 3, 1], strides = [1, 1, 1]} : vector<8x3x128xf32> to vector<8x3x1xf32>
    %28 = vector.shape_cast %27 : vector<8x3x1xf32> to vector<8x3xf32>
    %c0_13 = arith.constant 0 : index
    %c0_14 = arith.constant 0 : index
    %29 = vector.load %arg2[%c0_13, %c0_14] : memref<16x128xf32, #tpu.memory_space<vmem>>, vector<1x3xf32>
    %30 = vector.broadcast %29 : vector<1x3xf32> to vector<8x3xf32>
    %31 = arith.mulf %2, %30 : vector<8x3xf32>
    %c1 = arith.constant 1 : index
    %c0_15 = arith.constant 0 : index
    %32 = vector.load %arg2[%c1, %c0_15] : memref<16x128xf32, #tpu.memory_space<vmem>>, vector<1x3xf32>
    %33 = vector.broadcast %32 : vector<1x3xf32> to vector<8x3xf32>
    %34 = arith.mulf %18, %33 : vector<8x3xf32>
    %35 = arith.addf %31, %34 : vector<8x3xf32>
    %c2 = arith.constant 2 : index
    %c0_16 = arith.constant 0 : index
    %36 = vector.load %arg2[%c2, %c0_16] : memref<16x128xf32, #tpu.memory_space<vmem>>, vector<1x3xf32>
    %37 = vector.broadcast %36 : vector<1x3xf32> to vector<8x3xf32>
    %38 = arith.mulf %20, %37 : vector<8x3xf32>
    %39 = arith.addf %35, %38 : vector<8x3xf32>
    %c3 = arith.constant 3 : index
    %c0_17 = arith.constant 0 : index
    %40 = vector.load %arg2[%c3, %c0_17] : memref<16x128xf32, #tpu.memory_space<vmem>>, vector<1x3xf32>
    %41 = vector.broadcast %40 : vector<1x3xf32> to vector<8x3xf32>
    %42 = arith.mulf %7, %41 : vector<8x3xf32>
    %43 = arith.addf %39, %42 : vector<8x3xf32>
    %c4 = arith.constant 4 : index
    %c0_18 = arith.constant 0 : index
    %44 = vector.load %arg2[%c4, %c0_18] : memref<16x128xf32, #tpu.memory_space<vmem>>, vector<1x3xf32>
    %45 = vector.broadcast %44 : vector<1x3xf32> to vector<8x3xf32>
    %46 = arith.mulf %12, %45 : vector<8x3xf32>
    %47 = arith.addf %43, %46 : vector<8x3xf32>
    %c5 = arith.constant 5 : index
    %c0_19 = arith.constant 0 : index
    %48 = vector.load %arg2[%c5, %c0_19] : memref<16x128xf32, #tpu.memory_space<vmem>>, vector<1x3xf32>
    %49 = vector.broadcast %48 : vector<1x3xf32> to vector<8x3xf32>
    %50 = arith.mulf %22, %49 : vector<8x3xf32>
    %51 = arith.addf %47, %50 : vector<8x3xf32>
    %c6 = arith.constant 6 : index
    %c0_20 = arith.constant 0 : index
    %52 = vector.load %arg2[%c6, %c0_20] : memref<16x128xf32, #tpu.memory_space<vmem>>, vector<1x3xf32>
    %53 = vector.broadcast %52 : vector<1x3xf32> to vector<8x3xf32>
    %54 = arith.mulf %24, %53 : vector<8x3xf32>
    %55 = arith.addf %51, %54 : vector<8x3xf32>
    %c7 = arith.constant 7 : index
    %c0_21 = arith.constant 0 : index
    %56 = vector.load %arg2[%c7, %c0_21] : memref<16x128xf32, #tpu.memory_space<vmem>>, vector<1x3xf32>
    %57 = vector.broadcast %56 : vector<1x3xf32> to vector<8x3xf32>
    %58 = arith.mulf %26, %57 : vector<8x3xf32>
    %59 = arith.addf %55, %58 : vector<8x3xf32>
    %c8 = arith.constant 8 : index
    %c0_22 = arith.constant 0 : index
    %60 = vector.load %arg2[%c8, %c0_22] : memref<16x128xf32, #tpu.memory_space<vmem>>, vector<1x3xf32>
    %61 = vector.broadcast %60 : vector<1x3xf32> to vector<8x3xf32>
    %62 = arith.mulf %28, %61 : vector<8x3xf32>
    %63 = arith.addf %59, %62 : vector<8x3xf32>
    %cst_23 = arith.constant dense<0.000000e+00> : vector<8xf32>
    %64 = vector.multi_reduction <add>, %63, %cst_23 [1] : vector<8x3xf32> to vector<8xf32>
    %65 = vector.shape_cast %64 : vector<8xf32> to vector<8x1xf32>
    %c9 = arith.constant 9 : index
    %c0_24 = arith.constant 0 : index
    %66 = vector.load %arg2[%c9, %c0_24] : memref<16x128xf32, #tpu.memory_space<vmem>>, vector<1x1xf32>
    %67 = vector.broadcast %66 : vector<1x1xf32> to vector<8x1xf32>
    %68 = arith.addf %65, %67 : vector<8x1xf32>
    %69 = arith.negf %68 : vector<8x1xf32>
    %70 = math.exp %69 : vector<8x1xf32>
    %cst_25 = arith.constant 1.000000e+00 : f32
    %71 = vector.broadcast %cst_25 : f32 to vector<8x1xf32>
    %72 = arith.addf %71, %70 : vector<8x1xf32>
    %73 = arith.divf %71, %72 : vector<8x1xf32>
    %c0_26 = arith.constant 0 : index
    %c0_27 = arith.constant 0 : index
    %74 = vector.load %arg3[%c0_26, %c0_27] : memref<8x1xf32, #tpu.memory_space<vmem>>, vector<8x1xf32>
    tpu.vector_store %arg3[%c0_26, %c0_27], %73 {strides = array<i32>} : memref<8x1xf32, #tpu.memory_space<vmem>>, vector<8x1xf32>,
    return
  }
  func.func @transform_0(%arg0: i32) -> (i32, i32, i32, i32) {
    %c0_i32 = arith.constant 0 : i32
    %c0_i32_0 = arith.constant 0 : i32
    %c0_i32_1 = arith.constant 0 : i32
    %c0_i32_2 = arith.constant 0 : i32
    return %arg0, %c0_i32, %c0_i32_0, %c0_i32_1 : i32, i32, i32, i32
  }
  func.func @transform_1(%arg0: i32) -> (i32, i32) {
    %c0_i32 = arith.constant 0 : i32
    %c0_i32_0 = arith.constant 0 : i32
    %c0_i32_1 = arith.constant 0 : i32
    return %c0_i32, %c0_i32_0 : i32, i32
  }
  func.func @transform_2(%arg0: i32) -> (i32, i32) {
    %c0_i32 = arith.constant 0 : i32
    %c0_i32_0 = arith.constant 0 : i32
    return %arg0, %c0_i32 : i32, i32
  }
}

</mosaic_0001>

<llo_original>
// kernel: convnet_forward.1
$region0: #{convnet_forward.1}
  #allocation0 [shape = 'u32[]', space=smem, size = 0x4, offset = 0x4, fixed_abs, tag = 'smem constant byte address 0x4 - core index']
  #allocation1 [shape = 'u32[144,128]{1,0:T(1,128)}', space=vmem, size = 0x12000, scoped, tag = 'internal scratch']
  %s0 = inlined_call_operand.vmem [shape: f32[16,3,32,128], index: 0, kind: input, shape index: {}]
  %s1 = inlined_call_operand.vmem [shape: f32[16,128], index: 1, kind: input, shape index: {}]
  %s2 = inlined_call_operand.vmem [shape: f32[16,1], index: 2, kind: output, shape index: {}]
  %s3 = sld [smem:[#allocation0]]
  $region41: #{convnet_forward.1} parent=0
    _
  %s5 = ssub.s32 1, %s3
  %s6 = scalar_select 0, %s5, %s3
  loop: start=0, step=1, limit=4
  $region2: #{convnet_forward.1} parent=0 // loop_pre_header
    _
  $region3: #{convnet_forward.1} parent=0 // loop_header
    %s8 = sphi 0, %s12
    %p9 = scmp.ge.s32.totalorder %s8, 4
    %s18 = sphi 0, %s20
    %s21 = sphi 0, %s18
    %s22 = sphi 0, %s21
    %s38 = sphi 0, %s22
    %s42 = sphi 0, %s42
    %s44 = sphi 0, %s42
    %s45 = sphi 0, %s44
    %s59 = sphi 0, %s45
    %s65 = sphi 0, %s67
    %s68 = sphi 0, %s65
    %s69 = sphi 0, %s68
    %s85 = sphi 0, %s69
  $region4: #{convnet_forward.1} parent=0 // loop_header_branch
    %11 = sbr.rel (%p9) target = $region8
  $region5: #{convnet_forward.1} parent=0 // loop_body
    %s13 = ssub.s32 %s8, 1
    %s14 = ssub.s32 %s8, 2
    %s15 = sadd.s32 %s8, 1
    %s16 = ssub.s32 %s8, %s15
    %p17 = scmp.eq.s32.totalorder %s16, 0
    %s19 = sadd.s32 %s18, 1
    %s20 = scalar_select %p17, %s18, %s19
    %p23 = pneg %p17
    %p24 = scmp.eq.s32.totalorder %s8, 1
    %p25 = por %p23, %p24
    %p26 = scmp.ne.s32.totalorder %s18, %s21
    %p27 = scmp.eq.s32.totalorder %s8, 0
    %p28 = por %p26, %p27
    %p29 = scmp.ne.s32.totalorder %s18, %s21
    %p30 = scmp.eq.s32.totalorder %s13, 1
    %p31 = por %p29, %p30
    %p32 = scmp.ne.s32.totalorder %s21, %s22
    %p33 = scmp.eq.s32.totalorder %s13, 0
    %p34 = por %p32, %p33
    %p35 = scmp.ne.s32.totalorder %s21, %s22
    %p36 = scmp.eq.s32.totalorder %s14, 1
    %p37 = por %p35, %p36
    %p39 = scmp.ne.s32.totalorder %s22, %s38
    %p40 = scmp.eq.s32.totalorder %s14, 0
    %p41 = por %p39, %p40
    %s43 = sadd.s32 %s42, 1
    %p46 = scmp.eq.s32.totalorder %s8, 1
    %p47 = scmp.ne.s32.totalorder %s42, %s44
    %p48 = scmp.eq.s32.totalorder %s8, 0
    %p49 = por %p47, %p48
    %p50 = scmp.ne.s32.totalorder %s42, %s44
    %p51 = scmp.eq.s32.totalorder %s13, 1
    %p52 = por %p50, %p51
    %p53 = scmp.ne.s32.totalorder %s44, %s45
    %p54 = scmp.eq.s32.totalorder %s13, 0
    %p55 = por %p53, %p54
    %p56 = scmp.ne.s32.totalorder %s44, %s45
    %p57 = scmp.eq.s32.totalorder %s14, 1
    %p58 = por %p56, %p57
    %p60 = scmp.ne.s32.totalorder %s45, %s59
    %p61 = scmp.eq.s32.totalorder %s14, 0
    %p62 = por %p60, %p61
    %s63 = ssub.s32 %s8, %s15
    %p64 = scmp.eq.s32.totalorder %s63, 0
    %s66 = sadd.s32 %s65, 1
    %s67 = scalar_select %p64, %s65, %s66
    %p70 = pneg %p64
    %p71 = scmp.eq.s32.totalorder %s8, 1
    %p72 = por %p70, %p71
    %p73 = scmp.ne.s32.totalorder %s65, %s68
    %p74 = scmp.eq.s32.totalorder %s8, 0
    %p75 = por %p73, %p74
    %p76 = scmp.ne.s32.totalorder %s65, %s68
    %p77 = scmp.eq.s32.totalorder %s13, 1
    %p78 = por %p76, %p77
    %p79 = scmp.ne.s32.totalorder %s68, %s69
    %p80 = scmp.eq.s32.totalorder %s13, 0
    %p81 = por %p79, %p80
    %p82 = scmp.ne.s32.totalorder %s68, %s69
    %p83 = scmp.eq.s32.totalorder %s14, 1
    %p84 = por %p82, %p83
    %p86 = scmp.ne.s32.totalorder %s69, %s85
    %p87 = scmp.eq.s32.totalorder %s14, 0
    %p88 = por %p86, %p87
    %p89 = scmp.le.s32.totalorder 1, %s8
    %p90 = scmp.lt.s32.totalorder %s8, 3
    %p91 = pnand %p89, %p90
    %p92 = pneg %p91
    // Predicated region
    $region9: #{convnet_forward.1} parent=5 // pred_check
      _
    $region10: #{convnet_forward.1} parent=5 // pred_check_branch
      %94 = sbr.rel (%p91) target = $region12
    $region11: #{convnet_forward.1} parent=5 // pred_region
      %s95 = ssub.s32 %s8, 1
      // Predicated region
      $region13: #{convnet_forward.1} parent=11 // pred_check
        %p96 = pneg %p55
      $region14: #{convnet_forward.1} parent=11 // pred_check_branch
        %98 = sbr.rel (%p96) target = $region16
      $region15: #{convnet_forward.1} parent=11 // pred_region
        _
      $region16: #{convnet_forward.1} parent=11 // pred_fallthru
        _
    $region12: #{convnet_forward.1} parent=5 // pred_fallthru
      _
    %p99 = scmp.lt.s32.totalorder %s8, 2
    // Predicated region
    $region17: #{convnet_forward.1} parent=5 // pred_check
      %p100 = pneg %p99
    $region18: #{convnet_forward.1} parent=5 // pred_check_branch
      %102 = sbr.rel (%p100) target = $region20
    $region19: #{convnet_forward.1} parent=5 // pred_region
      // Predicated region
      $region21: #{convnet_forward.1} parent=19 // pred_check
        %p103 = pneg %p28
      $region22: #{convnet_forward.1} parent=19 // pred_check_branch
        %105 = sbr.rel (%p103) target = $region24
      $region23: #{convnet_forward.1} parent=19 // pred_region
        %s106 = smul.u32 8, %s8
        %p107 = scmp.lt.s32.totalorder %s106, 15
        %s108 = scalar_select %p107, %s106, 15
        %s109 = smul.addr %s108, 12
        %s110 = smul.addr %s109, 8
        %s111 = scalar_lea.vmem %s0, %s110
        %s112 = smul.u32 8, %s8
      $region24: #{convnet_forward.1} parent=19 // pred_fallthru
        _
    $region20: #{convnet_forward.1} parent=5 // pred_fallthru
      _
    %p113 = scmp.le.s32.totalorder 1, %s8
    %p114 = scmp.lt.s32.totalorder %s8, 3
    %p115 = pnand %p113, %p114
    %p116 = pneg %p115
    // Predicated region
    $region25: #{convnet_forward.1} parent=5 // pred_check
      _
    $region26: #{convnet_forward.1} parent=5 // pred_check_branch
      %118 = sbr.rel (%p115) target = $region28
    $region27: #{convnet_forward.1} parent=5 // pred_region
      %s119 = ssub.s32 %s8, 1
      %s120 = smul.u32 8, %s13
      %p121 = scmp.lt.s32.totalorder %s120, 15
      %s122 = scalar_select %p121, %s120, 15
      %s123 = smul.addr %s122, 12
      %s124 = smul.addr %s123, 8
      %s125 = scalar_lea.vmem %s0, %s124
      %p126 = pneg %p34
      %p127 = pneg %p31
      %p128 = pneg %p55
      %p129 = pneg %p52
      %p130 = pneg %p81
      %p131 = pneg %p78
      %p132 = scmp.lt.s32.totalorder %s13, 1
      %s133 = scalar_select %p132, %s13, 1
      %s134 = smul.addr %s133, 8
      %s135 = scalar_lea.vmem %s2, %s134
      %s136 = smul.u32 8, %s13
      %p137 = scmp.lt.s32.totalorder %s136, 15
      %s138 = scalar_select %p137, %s136, 15
      %s139 = smul.addr %s138, 12
      %s140 = smul.addr %s139, 8
      %s141 = scalar_lea.vmem %s0, %s140
      %s142 = smul.u32 8, %s13
      %p143 = scmp.lt.s32.totalorder %s13, 1
      %s144 = scalar_select %p143, %s13, 1
      %s145 = smul.addr %s144, 8
      %s146 = scalar_lea.vmem %s2, %s145
      %v147 = vld [vmem:[%s141] sm:$0xff]
      %v148 = vld [vmem:[%s141 + $0x8] sm:$0xff]
      %v149 = vld [vmem:[%s141 + $0x10] sm:$0xff]
      %v150 = vld [vmem:[%s141 + $0x18] sm:$0xff]
      %v151 = vld [vmem:[%s141 + $0x20] sm:$0xff]
      %v152 = vld [vmem:[%s141 + $0x28] sm:$0xff]
      %v153 = vld [vmem:[%s141 + $0x30] sm:$0xff]
      %v154 = vld [vmem:[%s141 + $0x38] sm:$0xff]
      %v155 = vld [vmem:[%s141 + $0x40] sm:$0xff]
      %v156 = vld [vmem:[%s141 + $0x48] sm:$0xff]
      %v157 = vld [vmem:[%s141 + $0x50] sm:$0xff]
      %v158 = vld [vmem:[%s141 + $0x58] sm:$0xff]
      %v159 = vld [vmem:[%s141 + $0x60] sm:$0xff]
      %v160 = vld [vmem:[%s141 + $0x68] sm:$0xff]
      %v161 = vld [vmem:[%s141 + $0x70] sm:$0xff]
      %v162 = vld [vmem:[%s141 + $0x78] sm:$0xff]
      %v163 = vld [vmem:[%s141 + $0x80] sm:$0xff]
      %v164 = vld [vmem:[%s141 + $0x88] sm:$0xff]
      %v165 = vld [vmem:[%s141 + $0x90] sm:$0xff]
      %v166 = vld [vmem:[%s141 + $0x98] sm:$0xff]
      %v167 = vld [vmem:[%s141 + $0xa0] sm:$0xff]
      %v168 = vld [vmem:[%s141 + $0xa8] sm:$0xff]
      %v169 = vld [vmem:[%s141 + $0xb0] sm:$0xff]
      %v170 = vld [vmem:[%s141 + $0xb8] sm:$0xff]
      %v171 = vld [vmem:[%s141 + $0xc0] sm:$0xff]
      %v172 = vld [vmem:[%s141 + $0xc8] sm:$0xff]
      %v173 = vld [vmem:[%s141 + $0xd0] sm:$0xff]
      %v174 = vld [vmem:[%s141 + $0xd8] sm:$0xff]
      %v175 = vld [vmem:[%s141 + $0xe0] sm:$0xff]
      %v176 = vld [vmem:[%s141 + $0xe8] sm:$0xff]
      %v177 = vld [vmem:[%s141 + $0xf0] sm:$0xff]
      %v178 = vld [vmem:[%s141 + $0xf8] sm:$0xff]
      %v179 = vld [vmem:[%s141 + $0x100] sm:$0xff]
      %v180 = vld [vmem:[%s141 + $0x108] sm:$0xff]
      %v181 = vld [vmem:[%s141 + $0x110] sm:$0xff]
      %v182 = vld [vmem:[%s141 + $0x118] sm:$0xff]
      %v183 = vld [vmem:[%s141 + $0x120] sm:$0xff]
      %v184 = vld [vmem:[%s141 + $0x128] sm:$0xff]
      %v185 = vld [vmem:[%s141 + $0x130] sm:$0xff]
      %v186 = vld [vmem:[%s141 + $0x138] sm:$0xff]
      %v187 = vld [vmem:[%s141 + $0x140] sm:$0xff]
      %v188 = vld [vmem:[%s141 + $0x148] sm:$0xff]
      %v189 = vld [vmem:[%s141 + $0x150] sm:$0xff]
      %v190 = vld [vmem:[%s141 + $0x158] sm:$0xff]
      %v191 = vld [vmem:[%s141 + $0x160] sm:$0xff]
      %v192 = vld [vmem:[%s141 + $0x168] sm:$0xff]
      %v193 = vld [vmem:[%s141 + $0x170] sm:$0xff]
      %v194 = vld [vmem:[%s141 + $0x178] sm:$0xff]
      %v195 = vld [vmem:[%s141 + $0x180] sm:$0xff]
      %v196 = vld [vmem:[%s141 + $0x188] sm:$0xff]
      %v197 = vld [vmem:[%s141 + $0x190] sm:$0xff]
      %v198 = vld [vmem:[%s141 + $0x198] sm:$0xff]
      %v199 = vld [vmem:[%s141 + $0x1a0] sm:$0xff]
      %v200 = vld [vmem:[%s141 + $0x1a8] sm:$0xff]
      %v201 = vld [vmem:[%s141 + $0x1b0] sm:$0xff]
      %v202 = vld [vmem:[%s141 + $0x1b8] sm:$0xff]
      %v203 = vld [vmem:[%s141 + $0x1c0] sm:$0xff]
      %v204 = vld [vmem:[%s141 + $0x1c8] sm:$0xff]
      %v205 = vld [vmem:[%s141 + $0x1d0] sm:$0xff]
      %v206 = vld [vmem:[%s141 + $0x1d8] sm:$0xff]
      %v207 = vld [vmem:[%s141 + $0x1e0] sm:$0xff]
      %v208 = vld [vmem:[%s141 + $0x1e8] sm:$0xff]
      %v209 = vld [vmem:[%s141 + $0x1f0] sm:$0xff]
      %v210 = vld [vmem:[%s141 + $0x1f8] sm:$0xff]
      %v211 = vld [vmem:[%s141 + $0x200] sm:$0xff]
      %v212 = vld [vmem:[%s141 + $0x208] sm:$0xff]
      %v213 = vld [vmem:[%s141 + $0x210] sm:$0xff]
      %v214 = vld [vmem:[%s141 + $0x218] sm:$0xff]
      %v215 = vld [vmem:[%s141 + $0x220] sm:$0xff]
      %v216 = vld [vmem:[%s141 + $0x228] sm:$0xff]
      %v217 = vld [vmem:[%s141 + $0x230] sm:$0xff]
      %v218 = vld [vmem:[%s141 + $0x238] sm:$0xff]
      %v219 = vld [vmem:[%s141 + $0x240] sm:$0xff]
      %v220 = vld [vmem:[%s141 + $0x248] sm:$0xff]
      %v221 = vld [vmem:[%s141 + $0x250] sm:$0xff]
      %v222 = vld [vmem:[%s141 + $0x258] sm:$0xff]
      %v223 = vld [vmem:[%s141 + $0x260] sm:$0xff]
      %v224 = vld [vmem:[%s141 + $0x268] sm:$0xff]
      %v225 = vld [vmem:[%s141 + $0x270] sm:$0xff]
      %v226 = vld [vmem:[%s141 + $0x278] sm:$0xff]
      %v227 = vld [vmem:[%s141 + $0x280] sm:$0xff]
      %v228 = vld [vmem:[%s141 + $0x288] sm:$0xff]
      %v229 = vld [vmem:[%s141 + $0x290] sm:$0xff]
      %v230 = vld [vmem:[%s141 + $0x298] sm:$0xff]
      %v231 = vld [vmem:[%s141 + $0x2a0] sm:$0xff]
      %v232 = vld [vmem:[%s141 + $0x2a8] sm:$0xff]
      %v233 = vld [vmem:[%s141 + $0x2b0] sm:$0xff]
      %v234 = vld [vmem:[%s141 + $0x2b8] sm:$0xff]
      %v235 = vld [vmem:[%s141 + $0x2c0] sm:$0xff]
      %v236 = vld [vmem:[%s141 + $0x2c8] sm:$0xff]
      %v237 = vld [vmem:[%s141 + $0x2d0] sm:$0xff]
      %v238 = vld [vmem:[%s141 + $0x2d8] sm:$0xff]
      %v239 = vld [vmem:[%s141 + $0x2e0] sm:$0xff]
      %v240 = vld [vmem:[%s141 + $0x2e8] sm:$0xff]
      %v241 = vld [vmem:[%s141 + $0x2f0] sm:$0xff]
      %v242 = vld [vmem:[%s141 + $0x2f8] sm:$0xff]
      %v243 = vadd.f32 %v147, %v148
      %v244 = vadd.f32 %v243, %v149
      %v245 = vadd.f32 %v244, %v150
      %v246 = vrot.slane %v245, 4
      %v247 = vadd.f32 %v245, %v246
      %v248 = vrot.slane %v247, 2
      %v249 = vadd.f32 %v247, %v248
      %v250 = vrot.slane %v249, 1
      %v251 = vadd.f32 %v249, %v250
      %v252 = vadd.f32 %v151, %v152
      %v253 = vadd.f32 %v252, %v153
      %v254 = vadd.f32 %v253, %v154
      %v255 = vrot.slane %v254, 4
      %v256 = vadd.f32 %v254, %v255
      %v257 = vrot.slane %v256, 2
      %v258 = vadd.f32 %v256, %v257
      %v259 = vrot.slane %v258, 1
      %v260 = vadd.f32 %v258, %v259
      %v261 = vadd.f32 %v155, %v156
      %v262 = vadd.f32 %v261, %v157
      %v263 = vadd.f32 %v262, %v158
      %v264 = vrot.slane %v263, 4
      %v265 = vadd.f32 %v263, %v264
      %v266 = vrot.slane %v265, 2
      %v267 = vadd.f32 %v265, %v266
      %v268 = vrot.slane %v267, 1
      %v269 = vadd.f32 %v267, %v268
      %v270 = vadd.f32 %v159, %v160
      %v271 = vadd.f32 %v270, %v161
      %v272 = vadd.f32 %v271, %v162
      %v273 = vrot.slane %v272, 4
      %v274 = vadd.f32 %v272, %v273
      %v275 = vrot.slane %v274, 2
      %v276 = vadd.f32 %v274, %v275
      %v277 = vrot.slane %v276, 1
      %v278 = vadd.f32 %v276, %v277
      %v279 = vadd.f32 %v163, %v164
      %v280 = vadd.f32 %v279, %v165
      %v281 = vadd.f32 %v280, %v166
      %v282 = vrot.slane %v281, 4
      %v283 = vadd.f32 %v281, %v282
      %v284 = vrot.slane %v283, 2
      %v285 = vadd.f32 %v283, %v284
      %v286 = vrot.slane %v285, 1
      %v287 = vadd.f32 %v285, %v286
      %v288 = vadd.f32 %v167, %v168
      %v289 = vadd.f32 %v288, %v169
      %v290 = vadd.f32 %v289, %v170
      %v291 = vrot.slane %v290, 4
      %v292 = vadd.f32 %v290, %v291
      %v293 = vrot.slane %v292, 2
      %v294 = vadd.f32 %v292, %v293
      %v295 = vrot.slane %v294, 1
      %v296 = vadd.f32 %v294, %v295
      %v297 = vadd.f32 %v171, %v172
      %v298 = vadd.f32 %v297, %v173
      %v299 = vadd.f32 %v298, %v174
      %v300 = vrot.slane %v299, 4
      %v301 = vadd.f32 %v299, %v300
      %v302 = vrot.slane %v301, 2
      %v303 = vadd.f32 %v301, %v302
      %v304 = vrot.slane %v303, 1
      %v305 = vadd.f32 %v303, %v304
      %v306 = vadd.f32 %v175, %v176
      %v307 = vadd.f32 %v306, %v177
      %v308 = vadd.f32 %v307, %v178
      %v309 = vrot.slane %v308, 4
      %v310 = vadd.f32 %v308, %v309
      %v311 = vrot.slane %v310, 2
      %v312 = vadd.f32 %v310, %v311
      %v313 = vrot.slane %v312, 1
      %v314 = vadd.f32 %v312, %v313
      %v315 = vadd.f32 %v179, %v180
      %v316 = vadd.f32 %v315, %v181
      %v317 = vadd.f32 %v316, %v182
      %v318 = vrot.slane %v317, 4
      %v319 = vadd.f32 %v317, %v318
      %v320 = vrot.slane %v319, 2
      %v321 = vadd.f32 %v319, %v320
      %v322 = vrot.slane %v321, 1
      %v323 = vadd.f32 %v321, %v322
      %v324 = vadd.f32 %v183, %v184
      %v325 = vadd.f32 %v324, %v185
      %v326 = vadd.f32 %v325, %v186
      %v327 = vrot.slane %v326, 4
      %v328 = vadd.f32 %v326, %v327
      %v329 = vrot.slane %v328, 2
      %v330 = vadd.f32 %v328, %v329
      %v331 = vrot.slane %v330, 1
      %v332 = vadd.f32 %v330, %v331
      %v333 = vadd.f32 %v187, %v188
      %v334 = vadd.f32 %v333, %v189
      %v335 = vadd.f32 %v334, %v190
      %v336 = vrot.slane %v335, 4
      %v337 = vadd.f32 %v335, %v336
      %v338 = vrot.slane %v337, 2
      %v339 = vadd.f32 %v337, %v338
      %v340 = vrot.slane %v339, 1
      %v341 = vadd.f32 %v339, %v340
      %v342 = vadd.f32 %v191, %v192
      %v343 = vadd.f32 %v342, %v193
      %v344 = vadd.f32 %v343, %v194
      %v345 = vrot.slane %v344, 4
      %v346 = vadd.f32 %v344, %v345
      %v347 = vrot.slane %v346, 2
      %v348 = vadd.f32 %v346, %v347
      %v349 = vrot.slane %v348, 1
      %v350 = vadd.f32 %v348, %v349
      %v351 = vadd.f32 %v195, %v196
      %v352 = vadd.f32 %v351, %v197
      %v353 = vadd.f32 %v352, %v198
      %v354 = vrot.slane %v353, 4
      %v355 = vadd.f32 %v353, %v354
      %v356 = vrot.slane %v355, 2
      %v357 = vadd.f32 %v355, %v356
      %v358 = vrot.slane %v357, 1
      %v359 = vadd.f32 %v357, %v358
      %v360 = vadd.f32 %v199, %v200
      %v361 = vadd.f32 %v360, %v201
      %v362 = vadd.f32 %v361, %v202
      %v363 = vrot.slane %v362, 4
      %v364 = vadd.f32 %v362, %v363
      %v365 = vrot.slane %v364, 2
      %v366 = vadd.f32 %v364, %v365
      %v367 = vrot.slane %v366, 1
      %v368 = vadd.f32 %v366, %v367
      %v369 = vadd.f32 %v203, %v204
      %v370 = vadd.f32 %v369, %v205
      %v371 = vadd.f32 %v370, %v206
      %v372 = vrot.slane %v371, 4
      %v373 = vadd.f32 %v371, %v372
      %v374 = vrot.slane %v373, 2
      %v375 = vadd.f32 %v373, %v374
      %v376 = vrot.slane %v375, 1
      %v377 = vadd.f32 %v375, %v376
      %v378 = vadd.f32 %v207, %v208
      %v379 = vadd.f32 %v378, %v209
      %v380 = vadd.f32 %v379, %v210
      %v381 = vrot.slane %v380, 4
      %v382 = vadd.f32 %v380, %v381
      %v383 = vrot.slane %v382, 2
      %v384 = vadd.f32 %v382, %v383
      %v385 = vrot.slane %v384, 1
      %v386 = vadd.f32 %v384, %v385
      %v387 = vadd.f32 %v211, %v212
      %v388 = vadd.f32 %v387, %v213
      %v389 = vadd.f32 %v388, %v214
      %v390 = vrot.slane %v389, 4
      %v391 = vadd.f32 %v389, %v390
      %v392 = vrot.slane %v391, 2
      %v393 = vadd.f32 %v391, %v392
      %v394 = vrot.slane %v393, 1
      %v395 = vadd.f32 %v393, %v394
      %v396 = vadd.f32 %v215, %v216
      %v397 = vadd.f32 %v396, %v217
      %v398 = vadd.f32 %v397, %v218
      %v399 = vrot.slane %v398, 4
      %v400 = vadd.f32 %v398, %v399
      %v401 = vrot.slane %v400, 2
      %v402 = vadd.f32 %v400, %v401
      %v403 = vrot.slane %v402, 1
      %v404 = vadd.f32 %v402, %v403
      %v405 = vadd.f32 %v219, %v220
      %v406 = vadd.f32 %v405, %v221
      %v407 = vadd.f32 %v406, %v222
      %v408 = vrot.slane %v407, 4
      %v409 = vadd.f32 %v407, %v408
      %v410 = vrot.slane %v409, 2
      %v411 = vadd.f32 %v409, %v410
      %v412 = vrot.slane %v411, 1
      %v413 = vadd.f32 %v411, %v412
      %v414 = vadd.f32 %v223, %v224
      %v415 = vadd.f32 %v414, %v225
      %v416 = vadd.f32 %v415, %v226
      %v417 = vrot.slane %v416, 4
      %v418 = vadd.f32 %v416, %v417
      %v419 = vrot.slane %v418, 2
      %v420 = vadd.f32 %v418, %v419
      %v421 = vrot.slane %v420, 1
      %v422 = vadd.f32 %v420, %v421
      %v423 = vadd.f32 %v227, %v228
      %v424 = vadd.f32 %v423, %v229
      %v425 = vadd.f32 %v424, %v230
      %v426 = vrot.slane %v425, 4
      %v427 = vadd.f32 %v425, %v426
      %v428 = vrot.slane %v427, 2
      %v429 = vadd.f32 %v427, %v428
      %v430 = vrot.slane %v429, 1
      %v431 = vadd.f32 %v429, %v430
      %v432 = vadd.f32 %v231, %v232
      %v433 = vadd.f32 %v432, %v233
      %v434 = vadd.f32 %v433, %v234
      %v435 = vrot.slane %v434, 4
      %v436 = vadd.f32 %v434, %v435
      %v437 = vrot.slane %v436, 2
      %v438 = vadd.f32 %v436, %v437
      %v439 = vrot.slane %v438, 1
      %v440 = vadd.f32 %v438, %v439
      %v441 = vadd.f32 %v235, %v236
      %v442 = vadd.f32 %v441, %v237
      %v443 = vadd.f32 %v442, %v238
      %v444 = vrot.slane %v443, 4
      %v445 = vadd.f32 %v443, %v444
      %v446 = vrot.slane %v445, 2
      %v447 = vadd.f32 %v445, %v446
      %v448 = vrot.slane %v447, 1
      %v449 = vadd.f32 %v447, %v448
      %v450 = vadd.f32 %v239, %v240
      %v451 = vadd.f32 %v450, %v241
      %v452 = vadd.f32 %v451, %v242
      %v453 = vrot.slane %v452, 4
      %v454 = vadd.f32 %v452, %v453
      %v455 = vrot.slane %v454, 2
      %v456 = vadd.f32 %v454, %v455
      %v457 = vrot.slane %v456, 1
      %v458 = vadd.f32 %v456, %v457
      %vm483 = vcmask 1041409
      %v484 = vsel %vm483, %v260, %v251
      %vm485 = vcmask 1042434
      %v486 = vsel %vm485, %v269, %v484
      %v487 = vsel %vm483, %v287, %v278
      %v488 = vsel %vm485, %v296, %v487
      %v489 = vsel %vm483, %v314, %v305
      %v490 = vsel %vm485, %v323, %v489
      %v491 = vsel %vm483, %v341, %v332
      %v492 = vsel %vm485, %v350, %v491
      %v493 = vsel %vm483, %v368, %v359
      %v494 = vsel %vm485, %v377, %v493
      %v495 = vsel %vm483, %v395, %v386
      %v496 = vsel %vm485, %v404, %v495
      %v497 = vsel %vm483, %v422, %v413
      %v498 = vsel %vm485, %v431, %v497
      %v499 = vsel %vm483, %v449, %v440
      %v500 = vsel %vm485, %v458, %v499
      %vm509 = vcmask 1042432
      %v510 = vsel %vm509, %v486, 0.0
      %511 = vadd.xlane.f32.xlu0 %v510
      %v512 = vpop.xlane.xlu0 %511
      %v513 = vsel %vm509, %v488, 0.0
      %514 = vadd.xlane.f32.xlu0 %v513
      %v515 = vpop.xlane.xlu0 %514
      %v516 = vsel %vm509, %v490, 0.0
      %517 = vadd.xlane.f32.xlu0 %v516
      %v518 = vpop.xlane.xlu0 %517
      %v519 = vsel %vm509, %v492, 0.0
      %520 = vadd.xlane.f32.xlu0 %v519
      %v521 = vpop.xlane.xlu0 %520
      %v522 = vsel %vm509, %v494, 0.0
      %523 = vadd.xlane.f32.xlu0 %v522
      %v524 = vpop.xlane.xlu0 %523
      %v525 = vsel %vm509, %v496, 0.0
      %526 = vadd.xlane.f32.xlu0 %v525
      %v527 = vpop.xlane.xlu0 %526
      %v528 = vsel %vm509, %v498, 0.0
      %529 = vadd.xlane.f32.xlu0 %v528
      %v530 = vpop.xlane.xlu0 %529
      %v531 = vsel %vm509, %v500, 0.0
      %532 = vadd.xlane.f32.xlu0 %v531
      %v533 = vpop.xlane.xlu0 %532
      %534 = vrot.lane.b32.xlu0 %v251, 64
      %v535 = vpop.permute.xlu0 %534
      %536 = vrot.lane.b32.xlu0 %v260, 64
      %v537 = vpop.permute.xlu0 %536
      %538 = vrot.lane.b32.xlu0 %v269, 64
      %v539 = vpop.permute.xlu0 %538
      %540 = vrot.lane.b32.xlu0 %v278, 64
      %v541 = vpop.permute.xlu0 %540
      %542 = vrot.lane.b32.xlu0 %v287, 64
      %v543 = vpop.permute.xlu0 %542
      %544 = vrot.lane.b32.xlu0 %v296, 64
      %v545 = vpop.permute.xlu0 %544
      %546 = vrot.lane.b32.xlu0 %v305, 64
      %v547 = vpop.permute.xlu0 %546
      %548 = vrot.lane.b32.xlu0 %v314, 64
      %v549 = vpop.permute.xlu0 %548
      %550 = vrot.lane.b32.xlu0 %v323, 64
      %v551 = vpop.permute.xlu0 %550
      %552 = vrot.lane.b32.xlu0 %v332, 64
      %v553 = vpop.permute.xlu0 %552
      %554 = vrot.lane.b32.xlu0 %v341, 64
      %v555 = vpop.permute.xlu0 %554
      %556 = vrot.lane.b32.xlu0 %v350, 64
      %v557 = vpop.permute.xlu0 %556
      %558 = vrot.lane.b32.xlu0 %v359, 64
      %v559 = vpop.permute.xlu0 %558
      %560 = vrot.lane.b32.xlu0 %v368, 64
      %v561 = vpop.permute.xlu0 %560
      %562 = vrot.lane.b32.xlu0 %v377, 64
      %v563 = vpop.permute.xlu0 %562
      %564 = vrot.lane.b32.xlu0 %v386, 64
      %v565 = vpop.permute.xlu0 %564
      %566 = vrot.lane.b32.xlu0 %v395, 64
      %v567 = vpop.permute.xlu0 %566
      %568 = vrot.lane.b32.xlu0 %v404, 64
      %v569 = vpop.permute.xlu0 %568
      %570 = vrot.lane.b32.xlu0 %v413, 64
      %v571 = vpop.permute.xlu0 %570
      %572 = vrot.lane.b32.xlu0 %v422, 64
      %v573 = vpop.permute.xlu0 %572
      %574 = vrot.lane.b32.xlu0 %v431, 64
      %v575 = vpop.permute.xlu0 %574
      %576 = vrot.lane.b32.xlu0 %v440, 64
      %v577 = vpop.permute.xlu0 %576
      %578 = vrot.lane.b32.xlu0 %v449, 64
      %v579 = vpop.permute.xlu0 %578
      %580 = vrot.lane.b32.xlu0 %v458, 64
      %v581 = vpop.permute.xlu0 %580
      %v606 = vadd.f32 %v251, %v535
      %v607 = vadd.f32 %v260, %v537
      %v608 = vadd.f32 %v269, %v539
      %v609 = vadd.f32 %v278, %v541
      %v610 = vadd.f32 %v287, %v543
      %v611 = vadd.f32 %v296, %v545
      %v612 = vadd.f32 %v305, %v547
      %v613 = vadd.f32 %v314, %v549
      %v614 = vadd.f32 %v323, %v551
      %v615 = vadd.f32 %v332, %v553
      %v616 = vadd.f32 %v341, %v555
      %v617 = vadd.f32 %v350, %v557
      %v618 = vadd.f32 %v359, %v559
      %v619 = vadd.f32 %v368, %v561
      %v620 = vadd.f32 %v377, %v563
      %v621 = vadd.f32 %v386, %v565
      %v622 = vadd.f32 %v395, %v567
      %v623 = vadd.f32 %v404, %v569
      %v624 = vadd.f32 %v413, %v571
      %v625 = vadd.f32 %v422, %v573
      %v626 = vadd.f32 %v431, %v575
      %v627 = vadd.f32 %v440, %v577
      %v628 = vadd.f32 %v449, %v579
      %v629 = vadd.f32 %v458, %v581
      %v630 = vld [vmem:[%s141] sm:$0x1]
      %v631 = vld [vmem:[%s141 + $0x20] sm:$0x1]
      %v632 = vld [vmem:[%s141 + $0x40] sm:$0x1]
      %v633 = vld [vmem:[%s141 + $0x60] sm:$0x1]
      %v634 = vld [vmem:[%s141 + $0x80] sm:$0x1]
      %v635 = vld [vmem:[%s141 + $0xa0] sm:$0x1]
      %v636 = vld [vmem:[%s141 + $0xc0] sm:$0x1]
      %v637 = vld [vmem:[%s141 + $0xe0] sm:$0x1]
      %v638 = vld [vmem:[%s141 + $0x100] sm:$0x1]
      %v639 = vld [vmem:[%s141 + $0x120] sm:$0x1]
      %v640 = vld [vmem:[%s141 + $0x140] sm:$0x1]
      %v641 = vld [vmem:[%s141 + $0x160] sm:$0x1]
      %v642 = vld [vmem:[%s141 + $0x180] sm:$0x1]
      %v643 = vld [vmem:[%s141 + $0x1a0] sm:$0x1]
      %v644 = vld [vmem:[%s141 + $0x1c0] sm:$0x1]
      %v645 = vld [vmem:[%s141 + $0x1e0] sm:$0x1]
      %v646 = vld [vmem:[%s141 + $0x200] sm:$0x1]
      %v647 = vld [vmem:[%s141 + $0x220] sm:$0x1]
      %v648 = vld [vmem:[%s141 + $0x240] sm:$0x1]
      %v649 = vld [vmem:[%s141 + $0x260] sm:$0x1]
      %v650 = vld [vmem:[%s141 + $0x280] sm:$0x1]
      %v651 = vld [vmem:[%s141 + $0x2a0] sm:$0x1]
      %v652 = vld [vmem:[%s141 + $0x2c0] sm:$0x1]
      %v653 = vld [vmem:[%s141 + $0x2e0] sm:$0x1]
      %v654 = vld [vmem:[%s141 + $0x1f] sm:$0x1]
      %v655 = vld [vmem:[%s141 + $0x3f] sm:$0x1]
      %v656 = vld [vmem:[%s141 + $0x5f] sm:$0x1]
      %v657 = vld [vmem:[%s141 + $0x7f] sm:$0x1]
      %v658 = vld [vmem:[%s141 + $0x9f] sm:$0x1]
      %v659 = vld [vmem:[%s141 + $0xbf] sm:$0x1]
      %v660 = vld [vmem:[%s141 + $0xdf] sm:$0x1]
      %v661 = vld [vmem:[%s141 + $0xff] sm:$0x1]
      %v662 = vld [vmem:[%s141 + $0x11f] sm:$0x1]
      %v663 = vld [vmem:[%s141 + $0x13f] sm:$0x1]
      %v664 = vld [vmem:[%s141 + $0x15f] sm:$0x1]
      %v665 = vld [vmem:[%s141 + $0x17f] sm:$0x1]
      %v666 = vld [vmem:[%s141 + $0x19f] sm:$0x1]
      %v667 = vld [vmem:[%s141 + $0x1bf] sm:$0x1]
      %v668 = vld [vmem:[%s141 + $0x1df] sm:$0x1]
      %v669 = vld [vmem:[%s141 + $0x1ff] sm:$0x1]
      %v670 = vld [vmem:[%s141 + $0x21f] sm:$0x1]
      %v671 = vld [vmem:[%s141 + $0x23f] sm:$0x1]
      %v672 = vld [vmem:[%s141 + $0x25f] sm:$0x1]
      %v673 = vld [vmem:[%s141 + $0x27f] sm:$0x1]
      %v674 = vld [vmem:[%s141 + $0x29f] sm:$0x1]
      %v675 = vld [vmem:[%s141 + $0x2bf] sm:$0x1]
      %v676 = vld [vmem:[%s141 + $0x2df] sm:$0x1]
      %v677 = vld [vmem:[%s141 + $0x2ff] sm:$0x1]
      %v702 = vrot.slane %v631, 7
      %v703 = vsel %vm483, %v702, %v630
      %v704 = vrot.slane %v632, 6
      %v705 = vsel %vm485, %v704, %v703
      %v706 = vrot.slane %v634, 7
      %v707 = vsel %vm483, %v706, %v633
      %v708 = vrot.slane %v635, 6
      %v709 = vsel %vm485, %v708, %v707
      %v710 = vrot.slane %v637, 7
      %v711 = vsel %vm483, %v710, %v636
      %v712 = vrot.slane %v638, 6
      %v713 = vsel %vm485, %v712, %v711
      %v714 = vrot.slane %v640, 7
      %v715 = vsel %vm483, %v714, %v639
      %v716 = vrot.slane %v641, 6
      %v717 = vsel %vm485, %v716, %v715
      %v718 = vrot.slane %v643, 7
      %v719 = vsel %vm483, %v718, %v642
      %v720 = vrot.slane %v644, 6
      %v721 = vsel %vm485, %v720, %v719
      %v722 = vrot.slane %v646, 7
      %v723 = vsel %vm483, %v722, %v645
      %v724 = vrot.slane %v647, 6
      %v725 = vsel %vm485, %v724, %v723
      %v726 = vrot.slane %v649, 7
      %v727 = vsel %vm483, %v726, %v648
      %v728 = vrot.slane %v650, 6
      %v729 = vsel %vm485, %v728, %v727
      %v730 = vrot.slane %v652, 7
      %v731 = vsel %vm483, %v730, %v651
      %v732 = vrot.slane %v653, 6
      %v733 = vsel %vm485, %v732, %v731
      %vm742 = vcmask 518144
      %v743 = vsel %vm742, %v705, 0.0
      %744 = vadd.xlane.f32.xlu0 %v743
      %v745 = vpop.xlane.xlu0 %744
      %v746 = vsel %vm742, %v709, 0.0
      %747 = vadd.xlane.f32.xlu0 %v746
      %v748 = vpop.xlane.xlu0 %747
      %v749 = vsel %vm742, %v713, 0.0
      %750 = vadd.xlane.f32.xlu0 %v749
      %v751 = vpop.xlane.xlu0 %750
      %v752 = vsel %vm742, %v717, 0.0
      %753 = vadd.xlane.f32.xlu0 %v752
      %v754 = vpop.xlane.xlu0 %753
      %v755 = vsel %vm742, %v721, 0.0
      %756 = vadd.xlane.f32.xlu0 %v755
      %v757 = vpop.xlane.xlu0 %756
      %v758 = vsel %vm742, %v725, 0.0
      %759 = vadd.xlane.f32.xlu0 %v758
      %v760 = vpop.xlane.xlu0 %759
      %v761 = vsel %vm742, %v729, 0.0
      %762 = vadd.xlane.f32.xlu0 %v761
      %v763 = vpop.xlane.xlu0 %762
      %v764 = vsel %vm742, %v733, 0.0
      %765 = vadd.xlane.f32.xlu0 %v764
      %v766 = vpop.xlane.xlu0 %765
      %v791 = vrot.slane %v655, 7
      %v792 = vsel %vm483, %v791, %v654
      %v793 = vrot.slane %v656, 6
      %v794 = vsel %vm485, %v793, %v792
      %v795 = vrot.slane %v658, 7
      %v796 = vsel %vm483, %v795, %v657
      %v797 = vrot.slane %v659, 6
      %v798 = vsel %vm485, %v797, %v796
      %v799 = vrot.slane %v661, 7
      %v800 = vsel %vm483, %v799, %v660
      %v801 = vrot.slane %v662, 6
      %v802 = vsel %vm485, %v801, %v800
      %v803 = vrot.slane %v664, 7
      %v804 = vsel %vm483, %v803, %v663
      %v805 = vrot.slane %v665, 6
      %v806 = vsel %vm485, %v805, %v804
      %v807 = vrot.slane %v667, 7
      %v808 = vsel %vm483, %v807, %v666
      %v809 = vrot.slane %v668, 6
      %v810 = vsel %vm485, %v809, %v808
      %v811 = vrot.slane %v670, 7
      %v812 = vsel %vm483, %v811, %v669
      %v813 = vrot.slane %v671, 6
      %v814 = vsel %vm485, %v813, %v812
      %v815 = vrot.slane %v673, 7
      %v816 = vsel %vm483, %v815, %v672
      %v817 = vrot.slane %v674, 6
      %v818 = vsel %vm485, %v817, %v816
      %v819 = vrot.slane %v676, 7
      %v820 = vsel %vm483, %v819, %v675
      %v821 = vrot.slane %v677, 6
      %v822 = vsel %vm485, %v821, %v820
      %823 = vrot.lane.b32.xlu0 %v794, 64
      %v824 = vpop.permute.xlu0 %823
      %825 = vrot.lane.b32.xlu0 %v798, 64
      %v826 = vpop.permute.xlu0 %825
      %827 = vrot.lane.b32.xlu0 %v802, 64
      %v828 = vpop.permute.xlu0 %827
      %829 = vrot.lane.b32.xlu0 %v806, 64
      %v830 = vpop.permute.xlu0 %829
      %831 = vrot.lane.b32.xlu0 %v810, 64
      %v832 = vpop.permute.xlu0 %831
      %833 = vrot.lane.b32.xlu0 %v814, 64
      %v834 = vpop.permute.xlu0 %833
      %835 = vrot.lane.b32.xlu0 %v818, 64
      %v836 = vpop.permute.xlu0 %835
      %837 = vrot.lane.b32.xlu0 %v822, 64
      %v838 = vpop.permute.xlu0 %837
      %v847 = vsel %vm742, %v824, 0.0
      %848 = vadd.xlane.f32.xlu0 %v847
      %v849 = vpop.xlane.xlu0 %848
      %v850 = vsel %vm742, %v826, 0.0
      %851 = vadd.xlane.f32.xlu0 %v850
      %v852 = vpop.xlane.xlu0 %851
      %v853 = vsel %vm742, %v828, 0.0
      %854 = vadd.xlane.f32.xlu0 %v853
      %v855 = vpop.xlane.xlu0 %854
      %v856 = vsel %vm742, %v830, 0.0
      %857 = vadd.xlane.f32.xlu0 %v856
      %v858 = vpop.xlane.xlu0 %857
      %v859 = vsel %vm742, %v832, 0.0
      %860 = vadd.xlane.f32.xlu0 %v859
      %v861 = vpop.xlane.xlu0 %860
      %v862 = vsel %vm742, %v834, 0.0
      %863 = vadd.xlane.f32.xlu0 %v862
      %v864 = vpop.xlane.xlu0 %863
      %v865 = vsel %vm742, %v836, 0.0
      %866 = vadd.xlane.f32.xlu0 %v865
      %v867 = vpop.xlane.xlu0 %866
      %v868 = vsel %vm742, %v838, 0.0
      %869 = vadd.xlane.f32.xlu0 %v868
      %v870 = vpop.xlane.xlu0 %869
      %v871 = vld [vmem:[%s1] sm:$0x1]
      %v872 = vlaneseq
      %v873 = vshrl.u32 %v872, 7
      %v874 = vsub.s32 0, %v873
      %v875 = vrot.slane %v871, %v874
      %878 = vbcast.lane.b32.xlu0 %v875, 256
      %v879 = vpop.permute.xlu0 %878
      %v881 = vmul.f32 %v512, %v879
      %v882 = vmul.f32 %v515, %v879
      %v883 = vmul.f32 %v518, %v879
      %v884 = vmul.f32 %v521, %v879
      %v885 = vmul.f32 %v524, %v879
      %v886 = vmul.f32 %v527, %v879
      %v887 = vmul.f32 %v530, %v879
      %v888 = vmul.f32 %v533, %v879
      %v889 = vld [vmem:[%s1 + $0x1] sm:$0x1]
      %v890 = vlaneseq
      %v891 = vshrl.u32 %v890, 7
      %v892 = vsub.s32 0, %v891
      %v893 = vrot.slane %v889, %v892
      %896 = vbcast.lane.b32.xlu0 %v893, 256
      %v897 = vpop.permute.xlu0 %896
      %v899 = vmul.f32 %v745, %v897
      %v900 = vmul.f32 %v748, %v897
      %v901 = vmul.f32 %v751, %v897
      %v902 = vmul.f32 %v754, %v897
      %v903 = vmul.f32 %v757, %v897
      %v904 = vmul.f32 %v760, %v897
      %v905 = vmul.f32 %v763, %v897
      %v906 = vmul.f32 %v766, %v897
      %v907 = vadd.f32 %v881, %v899
      %v908 = vadd.f32 %v882, %v900
      %v909 = vadd.f32 %v883, %v901
      %v910 = vadd.f32 %v884, %v902
      %v911 = vadd.f32 %v885, %v903
      %v912 = vadd.f32 %v886, %v904
      %v913 = vadd.f32 %v887, %v905
      %v914 = vadd.f32 %v888, %v906
      %v915 = vld [vmem:[%s1 + $0x2] sm:$0x1]
      %v916 = vlaneseq
      %v917 = vshrl.u32 %v916, 7
      %v918 = vsub.s32 0, %v917
      %v919 = vrot.slane %v915, %v918
      %922 = vbcast.lane.b32.xlu0 %v919, 256
      %v923 = vpop.permute.xlu0 %922
      %v925 = vmul.f32 %v849, %v923
      %v926 = vmul.f32 %v852, %v923
      %v927 = vmul.f32 %v855, %v923
      %v928 = vmul.f32 %v858, %v923
      %v929 = vmul.f32 %v861, %v923
      %v930 = vmul.f32 %v864, %v923
      %v931 = vmul.f32 %v867, %v923
      %v932 = vmul.f32 %v870, %v923
      %v933 = vadd.f32 %v907, %v925
      %v934 = vadd.f32 %v908, %v926
      %v935 = vadd.f32 %v909, %v927
      %v936 = vadd.f32 %v910, %v928
      %v937 = vadd.f32 %v911, %v929
      %v938 = vadd.f32 %v912, %v930
      %v939 = vadd.f32 %v913, %v931
      %v940 = vadd.f32 %v914, %v932
      %v941 = vld [vmem:[%s1 + $0x3] sm:$0x1]
      %v942 = vlaneseq
      %v943 = vshrl.u32 %v942, 7
      %v944 = vsub.s32 0, %v943
      %v945 = vrot.slane %v941, %v944
      %948 = vbcast.lane.b32.xlu0 %v945, 256
      %v949 = vpop.permute.xlu0 %948
      %v950 = vlaneseq
      %v951 = vshrl.u32 %v950, 7
      %v952 = vsub.s32 0, %v951
      %v953 = vrot.slane %v949, %v952
      %955 = vbcast.lane.b32.xlu0 %v953, 256
      %v956 = vpop.permute.xlu0 %955
      %v957 = vlaneseq
      %v958 = vshrl.u32 %v957, 7
      %v959 = vsub.s32 1, %v958
      %v960 = vrot.slane %v949, %v959
      %962 = vbcast.lane.b32.xlu0 %v960, 256
      %v963 = vpop.permute.xlu0 %962
      %v964 = vlaneseq
      %v965 = vshrl.u32 %v964, 7
      %v966 = vsub.s32 2, %v965
      %v967 = vrot.slane %v949, %v966
      %969 = vbcast.lane.b32.xlu0 %v967, 256
      %v970 = vpop.permute.xlu0 %969
      %v974 = vmul.f32 %v606, %v956
      %v975 = vmul.f32 %v607, %v963
      %v976 = vmul.f32 %v608, %v970
      %v977 = vmul.f32 %v609, %v956
      %v978 = vmul.f32 %v610, %v963
      %v979 = vmul.f32 %v611, %v970
      %v980 = vmul.f32 %v612, %v956
      %v981 = vmul.f32 %v613, %v963
      %v982 = vmul.f32 %v614, %v970
      %v983 = vmul.f32 %v615, %v956
      %v984 = vmul.f32 %v616, %v963
      %v985 = vmul.f32 %v617, %v970
      %v986 = vmul.f32 %v618, %v956
      %v987 = vmul.f32 %v619, %v963
      %v988 = vmul.f32 %v620, %v970
      %v989 = vmul.f32 %v621, %v956
      %v990 = vmul.f32 %v622, %v963
      %v991 = vmul.f32 %v623, %v970
      %v992 = vmul.f32 %v624, %v956
      %v993 = vmul.f32 %v625, %v963
      %v994 = vmul.f32 %v626, %v970
      %v995 = vmul.f32 %v627, %v956
      %v996 = vmul.f32 %v628, %v963
      %v997 = vmul.f32 %v629, %v970
      %v1022 = vrot.slane %v975, 7
      %v1023 = vsel %vm483, %v1022, %v974
      %v1024 = vrot.slane %v976, 6
      %v1025 = vsel %vm485, %v1024, %v1023
      %v1026 = vrot.slane %v978, 7
      %v1027 = vsel %vm483, %v1026, %v977
      %v1028 = vrot.slane %v979, 6
      %v1029 = vsel %vm485, %v1028, %v1027
      %v1030 = vrot.slane %v981, 7
      %v1031 = vsel %vm483, %v1030, %v980
      %v1032 = vrot.slane %v982, 6
      %v1033 = vsel %vm485, %v1032, %v1031
      %v1034 = vrot.slane %v984, 7
      %v1035 = vsel %vm483, %v1034, %v983
      %v1036 = vrot.slane %v985, 6
      %v1037 = vsel %vm485, %v1036, %v1035
      %v1038 = vrot.slane %v987, 7
      %v1039 = vsel %vm483, %v1038, %v986
      %v1040 = vrot.slane %v988, 6
      %v1041 = vsel %vm485, %v1040, %v1039
      %v1042 = vrot.slane %v990, 7
      %v1043 = vsel %vm483, %v1042, %v989
      %v1044 = vrot.slane %v991, 6
      %v1045 = vsel %vm485, %v1044, %v1043
      %v1046 = vrot.slane %v993, 7
      %v1047 = vsel %vm483, %v1046, %v992
      %v1048 = vrot.slane %v994, 6
      %v1049 = vsel %vm485, %v1048, %v1047
      %v1050 = vrot.slane %v996, 7
      %v1051 = vsel %vm483, %v1050, %v995
      %v1052 = vrot.slane %v997, 6
      %v1053 = vsel %vm485, %v1052, %v1051
      %v1062 = vadd.f32 %v933, %v1025
      %v1063 = vadd.f32 %v934, %v1029
      %v1064 = vadd.f32 %v935, %v1033
      %v1065 = vadd.f32 %v936, %v1037
      %v1066 = vadd.f32 %v937, %v1041
      %v1067 = vadd.f32 %v938, %v1045
      %v1068 = vadd.f32 %v939, %v1049
      %v1069 = vadd.f32 %v940, %v1053
      %v1070 = vld [vmem:[%s1 + $0x4] sm:$0x1]
      %v1071 = vlaneseq
      %v1072 = vshrl.u32 %v1071, 7
      %v1073 = vsub.s32 0, %v1072
      %v1074 = vrot.slane %v1070, %v1073
      %1077 = vbcast.lane.b32.xlu0 %v1074, 256
      %v1078 = vpop.permute.xlu0 %1077
      %v1079 = vlaneseq
      %v1080 = vshrl.u32 %v1079, 7
      %v1081 = vsub.s32 0, %v1080
      %v1082 = vrot.slane %v1078, %v1081
      %s1084 = sor.u32 256, 63
      %1085 = vbcast.lane.b32.xlu0 %v1082, %s1084
      %v1086 = vpop.permute.xlu0 %1085
      %v1087 = vlaneseq
      %v1088 = vshrl.u32 %v1087, 7
      %v1089 = vsub.s32 1, %v1088
      %v1090 = vrot.slane %v1078, %v1089
      %s1092 = sor.u32 256, 63
      %1093 = vbcast.lane.b32.xlu0 %v1090, %s1092
      %v1094 = vpop.permute.xlu0 %1093
      %v1095 = vlaneseq
      %v1096 = vshrl.u32 %v1095, 7
      %v1097 = vsub.s32 2, %v1096
      %v1098 = vrot.slane %v1078, %v1097
      %s1100 = sor.u32 256, 63
      %1101 = vbcast.lane.b32.xlu0 %v1098, %s1100
      %v1102 = vpop.permute.xlu0 %1101
      %v1106 = vmul.f32 %v606, %v1086
      %v1107 = vmul.f32 %v607, %v1094
      %v1108 = vmul.f32 %v608, %v1102
      %v1109 = vmul.f32 %v609, %v1086
      %v1110 = vmul.f32 %v610, %v1094
      %v1111 = vmul.f32 %v611, %v1102
      %v1112 = vmul.f32 %v612, %v1086
      %v1113 = vmul.f32 %v613, %v1094
      %v1114 = vmul.f32 %v614, %v1102
      %v1115 = vmul.f32 %v615, %v1086
      %v1116 = vmul.f32 %v616, %v1094
      %v1117 = vmul.f32 %v617, %v1102
      %v1118 = vmul.f32 %v618, %v1086
      %v1119 = vmul.f32 %v619, %v1094
      %v1120 = vmul.f32 %v620, %v1102
      %v1121 = vmul.f32 %v621, %v1086
      %v1122 = vmul.f32 %v622, %v1094
      %v1123 = vmul.f32 %v623, %v1102
      %v1124 = vmul.f32 %v624, %v1086
      %v1125 = vmul.f32 %v625, %v1094
      %v1126 = vmul.f32 %v626, %v1102
      %v1127 = vmul.f32 %v627, %v1086
      %v1128 = vmul.f32 %v628, %v1094
      %v1129 = vmul.f32 %v629, %v1102
      %v1154 = vrot.slane %v1107, 7
      %v1155 = vsel %vm483, %v1154, %v1106
      %v1156 = vrot.slane %v1108, 6
      %v1157 = vsel %vm485, %v1156, %v1155
      %v1158 = vrot.slane %v1110, 7
      %v1159 = vsel %vm483, %v1158, %v1109
      %v1160 = vrot.slane %v1111, 6
      %v1161 = vsel %vm485, %v1160, %v1159
      %v1162 = vrot.slane %v1113, 7
      %v1163 = vsel %vm483, %v1162, %v1112
      %v1164 = vrot.slane %v1114, 6
      %v1165 = vsel %vm485, %v1164, %v1163
      %v1166 = vrot.slane %v1116, 7
      %v1167 = vsel %vm483, %v1166, %v1115
      %v1168 = vrot.slane %v1117, 6
      %v1169 = vsel %vm485, %v1168, %v1167
      %v1170 = vrot.slane %v1119, 7
      %v1171 = vsel %vm483, %v1170, %v1118
      %v1172 = vrot.slane %v1120, 6
      %v1173 = vsel %vm485, %v1172, %v1171
      %v1174 = vrot.slane %v1122, 7
      %v1175 = vsel %vm483, %v1174, %v1121
      %v1176 = vrot.slane %v1123, 6
      %v1177 = vsel %vm485, %v1176, %v1175
      %v1178 = vrot.slane %v1125, 7
      %v1179 = vsel %vm483, %v1178, %v1124
      %v1180 = vrot.slane %v1126, 6
      %v1181 = vsel %vm485, %v1180, %v1179
      %v1182 = vrot.slane %v1128, 7
      %v1183 = vsel %vm483, %v1182, %v1127
      %v1184 = vrot.slane %v1129, 6
      %v1185 = vsel %vm485, %v1184, %v1183
      %1186 = vrot.lane.b32.xlu0 %v1157, 65
      %v1187 = vpop.permute.xlu0 %1186
      %1188 = vrot.lane.b32.xlu0 %v1161, 65
      %v1189 = vpop.permute.xlu0 %1188
      %1190 = vrot.lane.b32.xlu0 %v1165, 65
      %v1191 = vpop.permute.xlu0 %1190
      %1192 = vrot.lane.b32.xlu0 %v1169, 65
      %v1193 = vpop.permute.xlu0 %1192
      %1194 = vrot.lane.b32.xlu0 %v1173, 65
      %v1195 = vpop.permute.xlu0 %1194
      %1196 = vrot.lane.b32.xlu0 %v1177, 65
      %v1197 = vpop.permute.xlu0 %1196
      %1198 = vrot.lane.b32.xlu0 %v1181, 65
      %v1199 = vpop.permute.xlu0 %1198
      %1200 = vrot.lane.b32.xlu0 %v1185, 65
      %v1201 = vpop.permute.xlu0 %1200
      %v1210 = vadd.f32 %v1062, %v1187
      %v1211 = vadd.f32 %v1063, %v1189
      %v1212 = vadd.f32 %v1064, %v1191
      %v1213 = vadd.f32 %v1065, %v1193
      %v1214 = vadd.f32 %v1066, %v1195
      %v1215 = vadd.f32 %v1067, %v1197
      %v1216 = vadd.f32 %v1068, %v1199
      %v1217 = vadd.f32 %v1069, %v1201
      %v1218 = vld [vmem:[%s1 + $0x5] sm:$0x1]
      %v1219 = vlaneseq
      %v1220 = vshrl.u32 %v1219, 7
      %v1221 = vsub.s32 0, %v1220
      %v1222 = vrot.slane %v1218, %v1221
      %1225 = vbcast.lane.b32.xlu0 %v1222, 256
      %v1226 = vpop.permute.xlu0 %1225
      %v1227 = vlaneseq
      %v1228 = vshrl.u32 %v1227, 7
      %v1229 = vsub.s32 0, %v1228
      %v1230 = vrot.slane %v1226, %v1229
      %1232 = vbcast.lane.b32.xlu0 %v1230, 256
      %v1233 = vpop.permute.xlu0 %1232
      %v1234 = vlaneseq
      %v1235 = vshrl.u32 %v1234, 7
      %v1236 = vsub.s32 1, %v1235
      %v1237 = vrot.slane %v1226, %v1236
      %1239 = vbcast.lane.b32.xlu0 %v1237, 256
      %v1240 = vpop.permute.xlu0 %1239
      %v1241 = vlaneseq
      %v1242 = vshrl.u32 %v1241, 7
      %v1243 = vsub.s32 2, %v1242
      %v1244 = vrot.slane %v1226, %v1243
      %1246 = vbcast.lane.b32.xlu0 %v1244, 256
      %v1247 = vpop.permute.xlu0 %1246
      %v1251 = vmul.f32 %v630, %v1233
      %v1252 = vmul.f32 %v631, %v1240
      %v1253 = vmul.f32 %v632, %v1247
      %v1254 = vmul.f32 %v633, %v1233
      %v1255 = vmul.f32 %v634, %v1240
      %v1256 = vmul.f32 %v635, %v1247
      %v1257 = vmul.f32 %v636, %v1233
      %v1258 = vmul.f32 %v637, %v1240
      %v1259 = vmul.f32 %v638, %v1247
      %v1260 = vmul.f32 %v639, %v1233
      %v1261 = vmul.f32 %v640, %v1240
      %v1262 = vmul.f32 %v641, %v1247
      %v1263 = vmul.f32 %v642, %v1233
      %v1264 = vmul.f32 %v643, %v1240
      %v1265 = vmul.f32 %v644, %v1247
      %v1266 = vmul.f32 %v645, %v1233
      %v1267 = vmul.f32 %v646, %v1240
      %v1268 = vmul.f32 %v647, %v1247
      %v1269 = vmul.f32 %v648, %v1233
      %v1270 = vmul.f32 %v649, %v1240
      %v1271 = vmul.f32 %v650, %v1247
      %v1272 = vmul.f32 %v651, %v1233
      %v1273 = vmul.f32 %v652, %v1240
      %v1274 = vmul.f32 %v653, %v1247
      %v1299 = vrot.slane %v1252, 7
      %v1300 = vsel %vm483, %v1299, %v1251
      %v1301 = vrot.slane %v1253, 6
      %v1302 = vsel %vm485, %v1301, %v1300
      %v1303 = vrot.slane %v1255, 7
      %v1304 = vsel %vm483, %v1303, %v1254
      %v1305 = vrot.slane %v1256, 6
      %v1306 = vsel %vm485, %v1305, %v1304
      %v1307 = vrot.slane %v1258, 7
      %v1308 = vsel %vm483, %v1307, %v1257
      %v1309 = vrot.slane %v1259, 6
      %v1310 = vsel %vm485, %v1309, %v1308
      %v1311 = vrot.slane %v1261, 7
      %v1312 = vsel %vm483, %v1311, %v1260
      %v1313 = vrot.slane %v1262, 6
      %v1314 = vsel %vm485, %v1313, %v1312
      %v1315 = vrot.slane %v1264, 7
      %v1316 = vsel %vm483, %v1315, %v1263
      %v1317 = vrot.slane %v1265, 6
      %v1318 = vsel %vm485, %v1317, %v1316
      %v1319 = vrot.slane %v1267, 7
      %v1320 = vsel %vm483, %v1319, %v1266
      %v1321 = vrot.slane %v1268, 6
      %v1322 = vsel %vm485, %v1321, %v1320
      %v1323 = vrot.slane %v1270, 7
      %v1324 = vsel %vm483, %v1323, %v1269
      %v1325 = vrot.slane %v1271, 6
      %v1326 = vsel %vm485, %v1325, %v1324
      %v1327 = vrot.slane %v1273, 7
      %v1328 = vsel %vm483, %v1327, %v1272
      %v1329 = vrot.slane %v1274, 6
      %v1330 = vsel %vm485, %v1329, %v1328
      %v1339 = vadd.f32 %v1210, %v1302
      %v1340 = vadd.f32 %v1211, %v1306
      %v1341 = vadd.f32 %v1212, %v1310
      %v1342 = vadd.f32 %v1213, %v1314
      %v1343 = vadd.f32 %v1214, %v1318
      %v1344 = vadd.f32 %v1215, %v1322
      %v1345 = vadd.f32 %v1216, %v1326
      %v1346 = vadd.f32 %v1217, %v1330
      %v1347 = vld [vmem:[%s1 + $0x6] sm:$0x1]
      %v1348 = vlaneseq
      %v1349 = vshrl.u32 %v1348, 7
      %v1350 = vsub.s32 0, %v1349
      %v1351 = vrot.slane %v1347, %v1350
      %1354 = vbcast.lane.b32.xlu0 %v1351, 256
      %v1355 = vpop.permute.xlu0 %1354
      %v1356 = vlaneseq
      %v1357 = vshrl.u32 %v1356, 7
      %v1358 = vsub.s32 0, %v1357
      %v1359 = vrot.slane %v1355, %v1358
      %s1361 = sor.u32 256, 63
      %1362 = vbcast.lane.b32.xlu0 %v1359, %s1361
      %v1363 = vpop.permute.xlu0 %1362
      %v1364 = vlaneseq
      %v1365 = vshrl.u32 %v1364, 7
      %v1366 = vsub.s32 1, %v1365
      %v1367 = vrot.slane %v1355, %v1366
      %s1369 = sor.u32 256, 63
      %1370 = vbcast.lane.b32.xlu0 %v1367, %s1369
      %v1371 = vpop.permute.xlu0 %1370
      %v1372 = vlaneseq
      %v1373 = vshrl.u32 %v1372, 7
      %v1374 = vsub.s32 2, %v1373
      %v1375 = vrot.slane %v1355, %v1374
      %s1377 = sor.u32 256, 63
      %1378 = vbcast.lane.b32.xlu0 %v1375, %s1377
      %v1379 = vpop.permute.xlu0 %1378
      %v1383 = vmul.f32 %v630, %v1363
      %v1384 = vmul.f32 %v631, %v1371
      %v1385 = vmul.f32 %v632, %v1379
      %v1386 = vmul.f32 %v633, %v1363
      %v1387 = vmul.f32 %v634, %v1371
      %v1388 = vmul.f32 %v635, %v1379
      %v1389 = vmul.f32 %v636, %v1363
      %v1390 = vmul.f32 %v637, %v1371
      %v1391 = vmul.f32 %v638, %v1379
      %v1392 = vmul.f32 %v639, %v1363
      %v1393 = vmul.f32 %v640, %v1371
      %v1394 = vmul.f32 %v641, %v1379
      %v1395 = vmul.f32 %v642, %v1363
      %v1396 = vmul.f32 %v643, %v1371
      %v1397 = vmul.f32 %v644, %v1379
      %v1398 = vmul.f32 %v645, %v1363
      %v1399 = vmul.f32 %v646, %v1371
      %v1400 = vmul.f32 %v647, %v1379
      %v1401 = vmul.f32 %v648, %v1363
      %v1402 = vmul.f32 %v649, %v1371
      %v1403 = vmul.f32 %v650, %v1379
      %v1404 = vmul.f32 %v651, %v1363
      %v1405 = vmul.f32 %v652, %v1371
      %v1406 = vmul.f32 %v653, %v1379
      %v1431 = vrot.slane %v1384, 7
      %v1432 = vsel %vm483, %v1431, %v1383
      %v1433 = vrot.slane %v1385, 6
      %v1434 = vsel %vm485, %v1433, %v1432
      %v1435 = vrot.slane %v1387, 7
      %v1436 = vsel %vm483, %v1435, %v1386
      %v1437 = vrot.slane %v1388, 6
      %v1438 = vsel %vm485, %v1437, %v1436
      %v1439 = vrot.slane %v1390, 7
      %v1440 = vsel %vm483, %v1439, %v1389
      %v1441 = vrot.slane %v1391, 6
      %v1442 = vsel %vm485, %v1441, %v1440
      %v1443 = vrot.slane %v1393, 7
      %v1444 = vsel %vm483, %v1443, %v1392
      %v1445 = vrot.slane %v1394, 6
      %v1446 = vsel %vm485, %v1445, %v1444
      %v1447 = vrot.slane %v1396, 7
      %v1448 = vsel %vm483, %v1447, %v1395
      %v1449 = vrot.slane %v1397, 6
      %v1450 = vsel %vm485, %v1449, %v1448
      %v1451 = vrot.slane %v1399, 7
      %v1452 = vsel %vm483, %v1451, %v1398
      %v1453 = vrot.slane %v1400, 6
      %v1454 = vsel %vm485, %v1453, %v1452
      %v1455 = vrot.slane %v1402, 7
      %v1456 = vsel %vm483, %v1455, %v1401
      %v1457 = vrot.slane %v1403, 6
      %v1458 = vsel %vm485, %v1457, %v1456
      %v1459 = vrot.slane %v1405, 7
      %v1460 = vsel %vm483, %v1459, %v1404
      %v1461 = vrot.slane %v1406, 6
      %v1462 = vsel %vm485, %v1461, %v1460
      %1463 = vrot.lane.b32.xlu0 %v1434, 65
      %v1464 = vpop.permute.xlu0 %1463
      %1465 = vrot.lane.b32.xlu0 %v1438, 65
      %v1466 = vpop.permute.xlu0 %1465
      %1467 = vrot.lane.b32.xlu0 %v1442, 65
      %v1468 = vpop.permute.xlu0 %1467
      %1469 = vrot.lane.b32.xlu0 %v1446, 65
      %v1470 = vpop.permute.xlu0 %1469
      %1471 = vrot.lane.b32.xlu0 %v1450, 65
      %v1472 = vpop.permute.xlu0 %1471
      %1473 = vrot.lane.b32.xlu0 %v1454, 65
      %v1474 = vpop.permute.xlu0 %1473
      %1475 = vrot.lane.b32.xlu0 %v1458, 65
      %v1476 = vpop.permute.xlu0 %1475
      %1477 = vrot.lane.b32.xlu0 %v1462, 65
      %v1478 = vpop.permute.xlu0 %1477
      %v1487 = vadd.f32 %v1339, %v1464
      %v1488 = vadd.f32 %v1340, %v1466
      %v1489 = vadd.f32 %v1341, %v1468
      %v1490 = vadd.f32 %v1342, %v1470
      %v1491 = vadd.f32 %v1343, %v1472
      %v1492 = vadd.f32 %v1344, %v1474
      %v1493 = vadd.f32 %v1345, %v1476
      %v1494 = vadd.f32 %v1346, %v1478
      %v1495 = vld [vmem:[%s1 + $0x7] sm:$0x1]
      %v1496 = vlaneseq
      %v1497 = vshrl.u32 %v1496, 7
      %v1498 = vsub.s32 0, %v1497
      %v1499 = vrot.slane %v1495, %v1498
      %1502 = vbcast.lane.b32.xlu0 %v1499, 256
      %v1503 = vpop.permute.xlu0 %1502
      %v1504 = vlaneseq
      %v1505 = vshrl.u32 %v1504, 7
      %v1506 = vsub.s32 0, %v1505
      %v1507 = vrot.slane %v1503, %v1506
      %s1509 = sor.u32 256, 64
      %1510 = vbcast.lane.b32.xlu0 %v1507, %s1509
      %v1511 = vpop.permute.xlu0 %1510
      %v1512 = vlaneseq
      %v1513 = vshrl.u32 %v1512, 7
      %v1514 = vsub.s32 1, %v1513
      %v1515 = vrot.slane %v1503, %v1514
      %s1517 = sor.u32 256, 64
      %1518 = vbcast.lane.b32.xlu0 %v1515, %s1517
      %v1519 = vpop.permute.xlu0 %1518
      %v1520 = vlaneseq
      %v1521 = vshrl.u32 %v1520, 7
      %v1522 = vsub.s32 2, %v1521
      %v1523 = vrot.slane %v1503, %v1522
      %s1525 = sor.u32 256, 64
      %1526 = vbcast.lane.b32.xlu0 %v1523, %s1525
      %v1527 = vpop.permute.xlu0 %1526
      %v1531 = vmul.f32 %v654, %v1511
      %v1532 = vmul.f32 %v655, %v1519
      %v1533 = vmul.f32 %v656, %v1527
      %v1534 = vmul.f32 %v657, %v1511
      %v1535 = vmul.f32 %v658, %v1519
      %v1536 = vmul.f32 %v659, %v1527
      %v1537 = vmul.f32 %v660, %v1511
      %v1538 = vmul.f32 %v661, %v1519
      %v1539 = vmul.f32 %v662, %v1527
      %v1540 = vmul.f32 %v663, %v1511
      %v1541 = vmul.f32 %v664, %v1519
      %v1542 = vmul.f32 %v665, %v1527
      %v1543 = vmul.f32 %v666, %v1511
      %v1544 = vmul.f32 %v667, %v1519
      %v1545 = vmul.f32 %v668, %v1527
      %v1546 = vmul.f32 %v669, %v1511
      %v1547 = vmul.f32 %v670, %v1519
      %v1548 = vmul.f32 %v671, %v1527
      %v1549 = vmul.f32 %v672, %v1511
      %v1550 = vmul.f32 %v673, %v1519
      %v1551 = vmul.f32 %v674, %v1527
      %v1552 = vmul.f32 %v675, %v1511
      %v1553 = vmul.f32 %v676, %v1519
      %v1554 = vmul.f32 %v677, %v1527
      %v1579 = vrot.slane %v1532, 7
      %v1580 = vsel %vm483, %v1579, %v1531
      %v1581 = vrot.slane %v1533, 6
      %v1582 = vsel %vm485, %v1581, %v1580
      %v1583 = vrot.slane %v1535, 7
      %v1584 = vsel %vm483, %v1583, %v1534
      %v1585 = vrot.slane %v1536, 6
      %v1586 = vsel %vm485, %v1585, %v1584
      %v1587 = vrot.slane %v1538, 7
      %v1588 = vsel %vm483, %v1587, %v1537
      %v1589 = vrot.slane %v1539, 6
      %v1590 = vsel %vm485, %v1589, %v1588
      %v1591 = vrot.slane %v1541, 7
      %v1592 = vsel %vm483, %v1591, %v1540
      %v1593 = vrot.slane %v1542, 6
      %v1594 = vsel %vm485, %v1593, %v1592
      %v1595 = vrot.slane %v1544, 7
      %v1596 = vsel %vm483, %v1595, %v1543
      %v1597 = vrot.slane %v1545, 6
      %v1598 = vsel %vm485, %v1597, %v1596
      %v1599 = vrot.slane %v1547, 7
      %v1600 = vsel %vm483, %v1599, %v1546
      %v1601 = vrot.slane %v1548, 6
      %v1602 = vsel %vm485, %v1601, %v1600
      %v1603 = vrot.slane %v1550, 7
      %v1604 = vsel %vm483, %v1603, %v1549
      %v1605 = vrot.slane %v1551, 6
      %v1606 = vsel %vm485, %v1605, %v1604
      %v1607 = vrot.slane %v1553, 7
      %v1608 = vsel %vm483, %v1607, %v1552
      %v1609 = vrot.slane %v1554, 6
      %v1610 = vsel %vm485, %v1609, %v1608
      %1611 = vrot.lane.b32.xlu0 %v1582, 64
      %v1612 = vpop.permute.xlu0 %1611
      %1613 = vrot.lane.b32.xlu0 %v1586, 64
      %v1614 = vpop.permute.xlu0 %1613
      %1615 = vrot.lane.b32.xlu0 %v1590, 64
      %v1616 = vpop.permute.xlu0 %1615
      %1617 = vrot.lane.b32.xlu0 %v1594, 64
      %v1618 = vpop.permute.xlu0 %1617
      %1619 = vrot.lane.b32.xlu0 %v1598, 64
      %v1620 = vpop.permute.xlu0 %1619
      %1621 = vrot.lane.b32.xlu0 %v1602, 64
      %v1622 = vpop.permute.xlu0 %1621
      %1623 = vrot.lane.b32.xlu0 %v1606, 64
      %v1624 = vpop.permute.xlu0 %1623
      %1625 = vrot.lane.b32.xlu0 %v1610, 64
      %v1626 = vpop.permute.xlu0 %1625
      %v1635 = vadd.f32 %v1487, %v1612
      %v1636 = vadd.f32 %v1488, %v1614
      %v1637 = vadd.f32 %v1489, %v1616
      %v1638 = vadd.f32 %v1490, %v1618
      %v1639 = vadd.f32 %v1491, %v1620
      %v1640 = vadd.f32 %v1492, %v1622
      %v1641 = vadd.f32 %v1493, %v1624
      %v1642 = vadd.f32 %v1494, %v1626
      %v1643 = vld [vmem:[%s1 + $0x8] sm:$0x1]
      %v1644 = vlaneseq
      %v1645 = vshrl.u32 %v1644, 7
      %v1646 = vsub.s32 0, %v1645
      %v1647 = vrot.slane %v1643, %v1646
      %1650 = vbcast.lane.b32.xlu0 %v1647, 256
      %v1651 = vpop.permute.xlu0 %1650
      %v1652 = vlaneseq
      %v1653 = vshrl.u32 %v1652, 7
      %v1654 = vsub.s32 0, %v1653
      %v1655 = vrot.slane %v1651, %v1654
      %s1657 = sor.u32 256, 120
      %1658 = vbcast.lane.b32.xlu0 %v1655, %s1657
      %v1659 = vpop.permute.xlu0 %1658
      %v1660 = vlaneseq
      %v1661 = vshrl.u32 %v1660, 7
      %v1662 = vsub.s32 1, %v1661
      %v1663 = vrot.slane %v1651, %v1662
      %s1665 = sor.u32 256, 120
      %1666 = vbcast.lane.b32.xlu0 %v1663, %s1665
      %v1667 = vpop.permute.xlu0 %1666
      %v1668 = vlaneseq
      %v1669 = vshrl.u32 %v1668, 7
      %v1670 = vsub.s32 2, %v1669
      %v1671 = vrot.slane %v1651, %v1670
      %s1673 = sor.u32 256, 120
      %1674 = vbcast.lane.b32.xlu0 %v1671, %s1673
      %v1675 = vpop.permute.xlu0 %1674
      %v1676 = vrot.slane %v1659, 7
      %v1677 = vrot.slane %v1667, 7
      %v1678 = vrot.slane %v1675, 7
      %v1682 = vmul.f32 %v654, %v1676
      %v1683 = vmul.f32 %v655, %v1677
      %v1684 = vmul.f32 %v656, %v1678
      %v1685 = vmul.f32 %v657, %v1676
      %v1686 = vmul.f32 %v658, %v1677
      %v1687 = vmul.f32 %v659, %v1678
      %v1688 = vmul.f32 %v660, %v1676
      %v1689 = vmul.f32 %v661, %v1677
      %v1690 = vmul.f32 %v662, %v1678
      %v1691 = vmul.f32 %v663, %v1676
      %v1692 = vmul.f32 %v664, %v1677
      %v1693 = vmul.f32 %v665, %v1678
      %v1694 = vmul.f32 %v666, %v1676
      %v1695 = vmul.f32 %v667, %v1677
      %v1696 = vmul.f32 %v668, %v1678
      %v1697 = vmul.f32 %v669, %v1676
      %v1698 = vmul.f32 %v670, %v1677
      %v1699 = vmul.f32 %v671, %v1678
      %v1700 = vmul.f32 %v672, %v1676
      %v1701 = vmul.f32 %v673, %v1677
      %v1702 = vmul.f32 %v674, %v1678
      %v1703 = vmul.f32 %v675, %v1676
      %v1704 = vmul.f32 %v676, %v1677
      %v1705 = vmul.f32 %v677, %v1678
      %v1730 = vrot.slane %v1683, 7
      %v1731 = vsel %vm483, %v1730, %v1682
      %v1732 = vrot.slane %v1684, 6
      %v1733 = vsel %vm485, %v1732, %v1731
      %v1734 = vrot.slane %v1686, 7
      %v1735 = vsel %vm483, %v1734, %v1685
      %v1736 = vrot.slane %v1687, 6
      %v1737 = vsel %vm485, %v1736, %v1735
      %v1738 = vrot.slane %v1689, 7
      %v1739 = vsel %vm483, %v1738, %v1688
      %v1740 = vrot.slane %v1690, 6
      %v1741 = vsel %vm485, %v1740, %v1739
      %v1742 = vrot.slane %v1692, 7
      %v1743 = vsel %vm483, %v1742, %v1691
      %v1744 = vrot.slane %v1693, 6
      %v1745 = vsel %vm485, %v1744, %v1743
      %v1746 = vrot.slane %v1695, 7
      %v1747 = vsel %vm483, %v1746, %v1694
      %v1748 = vrot.slane %v1696, 6
      %v1749 = vsel %vm485, %v1748, %v1747
      %v1750 = vrot.slane %v1698, 7
      %v1751 = vsel %vm483, %v1750, %v1697
      %v1752 = vrot.slane %v1699, 6
      %v1753 = vsel %vm485, %v1752, %v1751
      %v1754 = vrot.slane %v1701, 7
      %v1755 = vsel %vm483, %v1754, %v1700
      %v1756 = vrot.slane %v1702, 6
      %v1757 = vsel %vm485, %v1756, %v1755
      %v1758 = vrot.slane %v1704, 7
      %v1759 = vsel %vm483, %v1758, %v1703
      %v1760 = vrot.slane %v1705, 6
      %v1761 = vsel %vm485, %v1760, %v1759
      %1762 = vrot.lane.b32.xlu0 %v1733, 1
      %v1763 = vpop.permute.xlu0 %1762
      %1764 = vrot.lane.b32.xlu0 %v1737, 1
      %v1765 = vpop.permute.xlu0 %1764
      %1766 = vrot.lane.b32.xlu0 %v1741, 1
      %v1767 = vpop.permute.xlu0 %1766
      %1768 = vrot.lane.b32.xlu0 %v1745, 1
      %v1769 = vpop.permute.xlu0 %1768
      %1770 = vrot.lane.b32.xlu0 %v1749, 1
      %v1771 = vpop.permute.xlu0 %1770
      %1772 = vrot.lane.b32.xlu0 %v1753, 1
      %v1773 = vpop.permute.xlu0 %1772
      %1774 = vrot.lane.b32.xlu0 %v1757, 1
      %v1775 = vpop.permute.xlu0 %1774
      %1776 = vrot.lane.b32.xlu0 %v1761, 1
      %v1777 = vpop.permute.xlu0 %1776
      %v1786 = vadd.f32 %v1635, %v1763
      %v1787 = vadd.f32 %v1636, %v1765
      %v1788 = vadd.f32 %v1637, %v1767
      %v1789 = vadd.f32 %v1638, %v1769
      %v1790 = vadd.f32 %v1639, %v1771
      %v1791 = vadd.f32 %v1640, %v1773
      %v1792 = vadd.f32 %v1641, %v1775
      %v1793 = vadd.f32 %v1642, %v1777
      %1802 = vset.pattern.permute.xlu0 0
      %1803 = vperm.xlu0 %1802, %v1786
      %v1804 = vpop.permute.xlu0 %1803
      %1805 = vset.pattern.permute.xlu0 0
      %1806 = vperm.xlu0 %1805, %v1787
      %v1807 = vpop.permute.xlu0 %1806
      %1808 = vset.pattern.permute.xlu0 0
      %1809 = vperm.xlu0 %1808, %v1788
      %v1810 = vpop.permute.xlu0 %1809
      %1811 = vset.pattern.permute.xlu0 0
      %1812 = vperm.xlu0 %1811, %v1789
      %v1813 = vpop.permute.xlu0 %1812
      %1814 = vset.pattern.permute.xlu0 0
      %1815 = vperm.xlu0 %1814, %v1790
      %v1816 = vpop.permute.xlu0 %1815
      %1817 = vset.pattern.permute.xlu0 0
      %1818 = vperm.xlu0 %1817, %v1791
      %v1819 = vpop.permute.xlu0 %1818
      %1820 = vset.pattern.permute.xlu0 0
      %1821 = vperm.xlu0 %1820, %v1792
      %v1822 = vpop.permute.xlu0 %1821
      %1823 = vset.pattern.permute.xlu0 0
      %1824 = vperm.xlu0 %1823, %v1793
      %v1825 = vpop.permute.xlu0 %1824
      %v1826 = vlaneseq
      %v1827 = vand.u32 %v1826, 127
      %v1828 = vlaneseq
      %v1829 = vshrl.u32 %v1828, 7
      %v1830 = vsub.s32 %v1827, %v1829
      %v1831 = vrot.slane %v1804, %v1830
      %v1832 = vlaneseq
      %v1833 = vshrl.u32 %v1832, 7
      %v1834 = vsub.s32 %v1827, %v1833
      %v1835 = vrot.slane %v1807, %v1834
      %v1836 = vlaneseq
      %v1837 = vshrl.u32 %v1836, 7
      %v1838 = vsub.s32 %v1827, %v1837
      %v1839 = vrot.slane %v1810, %v1838
      %v1840 = vlaneseq
      %v1841 = vshrl.u32 %v1840, 7
      %v1842 = vsub.s32 %v1827, %v1841
      %v1843 = vrot.slane %v1813, %v1842
      %v1844 = vlaneseq
      %v1845 = vshrl.u32 %v1844, 7
      %v1846 = vsub.s32 %v1827, %v1845
      %v1847 = vrot.slane %v1816, %v1846
      %v1848 = vlaneseq
      %v1849 = vshrl.u32 %v1848, 7
      %v1850 = vsub.s32 %v1827, %v1849
      %v1851 = vrot.slane %v1819, %v1850
      %v1852 = vlaneseq
      %v1853 = vshrl.u32 %v1852, 7
      %v1854 = vsub.s32 %v1827, %v1853
      %v1855 = vrot.slane %v1822, %v1854
      %v1856 = vlaneseq
      %v1857 = vshrl.u32 %v1856, 7
      %v1858 = vsub.s32 %v1827, %v1857
      %v1859 = vrot.slane %v1825, %v1858
      %v1860 = vsel %vm483, %v1835, %v1831
      %v1861 = vsel %vm485, %v1839, %v1860
      %vm1862 = vcmask 1043459
      %v1863 = vsel %vm1862, %v1843, %v1861
      %vm1864 = vcmask 1044484
      %v1865 = vsel %vm1864, %v1847, %v1863
      %vm1866 = vcmask 1045509
      %v1867 = vsel %vm1866, %v1851, %v1865
      %vm1868 = vcmask 1046534
      %v1869 = vsel %vm1868, %v1855, %v1867
      %vm1870 = vcmask 1047559
      %v1871 = vsel %vm1870, %v1859, %v1869
      %vm1873 = vcmask 23552
      %v1874 = vsel %vm1873, %v1871, 0.0
      %1875 = vadd.xlane.f32.xlu0 %v1874
      %v1876 = vpop.xlane.xlu0 %1875
      %v1877 = vld [vmem:[%s1 + $0x9] sm:$0x1]
      %v1878 = vlaneseq
      %v1879 = vshrl.u32 %v1878, 7
      %v1880 = vsub.s32 0, %v1879
      %v1881 = vrot.slane %v1877, %v1880
      %v1882 = vadd.f32 %v1876, %v1881
      %v1883 = vxor.u32 %v1882, 2147483648
      %v1884 = vmul.f32 %v1883, 1.442695
      %v1885 = vpow.pop %v1884
      %v1886 = vadd.f32 %v1885, 1.0
      %v1887 = vrcp.pop %v1886
      %v1888 = vmul.f32 1.0, %v1887
      %vm1889 = vcmask 7168
      %1890 = vst.msk [vmem:[%s146] sm:$0xff] %vm1889, %v1888
      %p1891 = scmp.lt.s32.totalorder %s13, 1
      %s1892 = scalar_select %p1891, %s13, 1
      %s1893 = smul.addr %s1892, 8
      %s1894 = scalar_lea.vmem %s2, %s1893
      // Predicated region
      $region29: #{convnet_forward.1} parent=27 // pred_check
        %p1895 = pneg %p78
      $region30: #{convnet_forward.1} parent=27 // pred_check_branch
        %1897 = sbr.rel (%p1895) target = $region32
      $region31: #{convnet_forward.1} parent=27 // pred_region
        _
      $region32: #{convnet_forward.1} parent=27 // pred_fallthru
        _
    $region28: #{convnet_forward.1} parent=5 // pred_fallthru
      _
    %p1898 = scmp.le.s32.totalorder 2, %s8
    // Predicated region
    $region33: #{convnet_forward.1} parent=5 // pred_check
      %p1899 = pneg %p1898
    $region34: #{convnet_forward.1} parent=5 // pred_check_branch
      %1901 = sbr.rel (%p1899) target = $region36
    $region35: #{convnet_forward.1} parent=5 // pred_region
      %s1902 = ssub.s32 %s8, 2
      // Predicated region
      $region37: #{convnet_forward.1} parent=35 // pred_check
        %p1903 = pneg %p84
      $region38: #{convnet_forward.1} parent=35 // pred_check_branch
        %1905 = sbr.rel (%p1903) target = $region40
      $region39: #{convnet_forward.1} parent=35 // pred_region
        %p1906 = scmp.lt.s32.totalorder %s14, 1
        %s1907 = scalar_select %p1906, %s14, 1
        %s1908 = smul.addr %s1907, 8
        %s1909 = scalar_lea.vmem %s2, %s1908
      $region40: #{convnet_forward.1} parent=35 // pred_fallthru
        _
    $region36: #{convnet_forward.1} parent=5 // pred_fallthru
      _
  $region6: #{convnet_forward.1} parent=0 // loop_footer
    %s12 = sadd.s32 1, %s8
  $region7: #{convnet_forward.1} parent=0 // loop_footer_branch
    %7 = sbr.rel target = $region3
  $region8: #{convnet_forward.1} parent=0 // loop_exit
    _

</llo_original>
